<compile_context>
chip_gen: v7x
topology: tpu7x:2x2x1
jax: 0.10.0
libtpu: 0.0.40
codegen_flags: <defaults>
</compile_context>

<pallas_src>
import functools

import numpy as np
import jax
import jax.numpy as jnp
from jax.experimental import pallas as pl
from jax.experimental.pallas import tpu as pltpu


def _bilinear_weight_matrix(in_size: int, out_size: int) -> np.ndarray:
    """(out_size, in_size) interpolation matrix reproducing PyTorch's bilinear
    resize with align_corners=False (half-pixel centers, src clamped to >= 0).
    Built in numpy so it constant-folds into the jitted program."""
    scale = in_size / out_size
    dst = np.arange(out_size, dtype=np.float64)
    src = np.maximum((dst + 0.5) * scale - 0.5, 0.0)   # PyTorch clamps negatives
    i0 = np.minimum(np.floor(src).astype(np.int64), in_size - 1)
    i1 = np.minimum(i0 + 1, in_size - 1)
    frac = (src - i0).astype(np.float32)
    w = np.zeros((out_size, in_size), dtype=np.float32)
    rows = np.arange(out_size)
    np.add.at(w, (rows, i0), 1.0 - frac)
    np.add.at(w, (rows, i1), frac)
    return w


def _tpu_vmem_capacity_bytes() -> int:
    """Physical VMEM capacity (128 MiB v5e/v6e, 64 MiB v7x); conservative
    fallback if the query is unavailable."""
    try:
        return int(pltpu.get_tpu_info().vmem_capacity_bytes)
    except Exception:
        return 64 * 1024 * 1024


def _tpu_num_tensorcores() -> int:
    """TensorCores per chip: 2 on v7x (grid 'parallel' axes shard across them),
    1 on v5e/v6e."""
    try:
        kind = jax.devices()[0].device_kind.lower()
    except Exception:
        return 1
    return 2 if "7" in kind else 1


def _vmem_need_bytes(bc, h_in, w_in, h_out, w_out, item):
    """VMEM footprint for one grid step.  Pallas double-buffers every pipelined
    input/output block -- including the grid-invariant weight blocks -- so
    count 2x for all of them (perf-review accounting fix)."""
    blocks = 2 * bc * (h_in * w_in + h_out * w_out) * item       # x / out blocks
    weights = 2 * (h_out * h_in + w_in * w_out) * item           # wh / wwT blocks
    bcast = bc * (h_out * h_in + w_in * w_out) * item            # in-kernel weight broadcast
    inter = bc * min(h_in * w_out, h_out * w_in) * 4             # f32 intermediate
    result = bc * h_out * w_out * 4                              # f32 result pre-cast
    return blocks + weights + bcast + inter + result


def _pick_block_batch(b, h_in, w_in, h_out, w_out, item, vmem_budget, n_cores):
    """Images (flattened N*C) per grid step.  With the natural (B, H, W) layout
    the block's last two dims equal the full array dims, so bc needs no
    128-lane alignment -- any divisor of B works."""
    divisors = [d for d in range(1, b + 1) if b % d == 0]
    fitting = [d for d in divisors
               if _vmem_need_bytes(d, h_in, w_in, h_out, w_out, item) <= vmem_budget]
    if not fitting:
        # TODO(synk): add secondary tiling over H_out (split wh rows / output
        # rows across the grid) for single images too large for VMEM; bc=1 can
        # still exceed the limit in that regime.
        return 1
    best = max(fitting)
    if n_cores >= 2 and b >= n_cores:
        # v7x: prefer >= 2 grid steps so both TensorCores get work.
        multi = [d for d in fitting if (b // d) >= n_cores]
        if multi:
            best = max(multi)
    return best


def _make_kernel(w_first: bool, compute_dtype):
    """Two dense batched MXU matmuls per grid step (order chosen statically so
    the smaller intermediate is produced first)."""

    def kernel(wh_ref, wwt_ref, x_ref, o_ref):
        # wh_ref : (H_out, H_in)      H-pass weights (grid-invariant)
        # wwt_ref: (W_in,  W_out)     W-pass weights (grid-invariant)
        # x_ref  : (bc, H_in, W_in)   natural-layout input block
        # o_ref  : (bc, H_out, W_out) natural-layout output block
        x = x_ref[...]
        bc = x.shape[0]
        wh = jnp.broadcast_to(wh_ref[...], (bc,) + wh_ref.shape)
        wwt = jnp.broadcast_to(wwt_ref[...], (bc,) + wwt_ref.shape)
        if w_first:
            t = jnp.einsum("bhw,bwj->bhj", x, wwt,
                           preferred_element_type=jnp.float32)
            t = t.astype(compute_dtype)          # keep both passes uniform dtype
            out = jnp.einsum("bih,bhj->bij", wh, t,
                             preferred_element_type=jnp.float32)
        else:
            t = jnp.einsum("bih,bhw->biw", wh, x,
                           preferred_element_type=jnp.float32)
            t = t.astype(compute_dtype)
            out = jnp.einsum("biw,bwj->bij", t, wwt,
                             preferred_element_type=jnp.float32)
        o_ref[...] = out.astype(o_ref.dtype)

    return kernel


@functools.partial(jax.jit, static_argnums=(1,))
def upsample_bilinear(x: jnp.ndarray, output_size) -> jnp.ndarray:
    """x: (N, C, H_in, W_in) -> (N, C, H_out, W_out), bilinear,
    align_corners=False (same semantics as the PyTorch module)."""
    n, c, h_in, w_in = x.shape
    h_out, w_out = output_size
    b = n * c

    orig_dtype = x.dtype
    if orig_dtype == jnp.float32 or orig_dtype == jnp.bfloat16:
        compute_dtype = orig_dtype
    else:
        compute_dtype = jnp.float32
    item = np.dtype(compute_dtype).itemsize

    # Generation-aware VMEM budget and scoped limit.
    vmem_cap = _tpu_vmem_capacity_bytes()
    vmem_limit = max(32 * 1024 * 1024, min((vmem_cap * 3) // 4, 96 * 1024 * 1024))
    n_cores = _tpu_num_tensorcores()

    bc = _pick_block_batch(b, h_in, w_in, h_out, w_out, item,
                           vmem_budget=(vmem_limit * 4) // 5, n_cores=n_cores)
    grid = b // bc

    # Interpolation weights, baked in as constants under jit.
    # NOTE(correctness): for bf16 inputs the weights are rounded to bf16 so
    # both MXU passes are uniform bf16 x bf16; keep them f32 here instead if
    # bit-level parity with PyTorch matters more than the mixed-dtype cost.
    wh = jnp.asarray(_bilinear_weight_matrix(h_in, h_out), dtype=compute_dtype)
    wwt = jnp.asarray(_bilinear_weight_matrix(w_in, w_out).T, dtype=compute_dtype)

    # Pure reshape (no HBM transpose): natural (N*C, H_in, W_in) layout.
    x3 = x.reshape(b, h_in, w_in).astype(compute_dtype)

    # Run the pass with the smaller intermediate first.
    w_first = (h_in * w_out) <= (h_out * w_in)

    out3 = pl.pallas_call(
        _make_kernel(w_first, compute_dtype),
        out_shape=jax.ShapeDtypeStruct((b, h_out, w_out), compute_dtype),
        grid_spec=pltpu.PrefetchScalarGridSpec(
            num_scalar_prefetch=0,
            grid=(grid,),
            in_specs=[
                pl.BlockSpec((h_out, h_in), lambda g: (0, 0)),      # wh (resident)
                pl.BlockSpec((w_in, w_out), lambda g: (0, 0)),      # wwT (resident)
                pl.BlockSpec((bc, h_in, w_in), lambda g: (g, 0, 0)),
            ],
            out_specs=pl.BlockSpec((bc, h_out, w_out), lambda g: (g, 0, 0)),
        ),
        compiler_params=pltpu.CompilerParams(
            dimension_semantics=("parallel",),
            vmem_limit_bytes=int(vmem_limit),
        ),
    )(wh, wwt, x3)

    # Pure reshape back to NCHW (no transpose).
    return out3.reshape(n, c, h_out, w_out).astype(orig_dtype)


if __name__ == "__main__":
    key = jax.random.PRNGKey(0)
    # Small NCHW input consistent with the module's forward.
    x = jax.random.normal(key, (2, 4, 16, 16), dtype=jnp.float32)
    output_size = (32, 24)

    out = jax.block_until_ready(upsample_bilinear(x, output_size))
    assert out.shape == (2, 4, 32, 24), out.shape

    # Pure-JAX reference of the same separable bilinear formulation.
    wh_ref = jnp.asarray(_bilinear_weight_matrix(16, 32))
    ww_ref = jnp.asarray(_bilinear_weight_matrix(16, 24))
    ref = jnp.einsum("oh,nchw,vw->ncov", wh_ref, x, ww_ref)
    assert jnp.allclose(out, ref, atol=1e-5, rtol=1e-5), \
        float(jnp.max(jnp.abs(out - ref)))

    print("KERNEL_OK")
</pallas_src>

<mosaic_0001>
module attributes {stable_mosaic.version = 11 : i64} {
  func.func @kernel(%arg0: i32, %arg1: memref<32x16xf32, #tpu.memory_space<vmem>>, %arg2: memref<16x24xf32, #tpu.memory_space<vmem>>, %arg3: memref<8x16x16xf32, #tpu.memory_space<vmem>>, %arg4: memref<8x32x24xf32, #tpu.memory_space<vmem>>) attributes {dimension_semantics = [#tpu.dimension_semantics<parallel>], iteration_bounds = array<i64: 1>, scalar_prefetch = 0 : i64, scratch_operands = 0 : i64, tpu.core_type = #tpu.core_type<tc>, window_params = [{pipeline_mode = #tpu.pipeline_mode<synchronous>, transform_indices = @transform_0, window_bounds = array<i64: 32, 16>}, {pipeline_mode = #tpu.pipeline_mode<synchronous>, transform_indices = @transform_1, window_bounds = array<i64: 16, 24>}, {transform_indices = @transform_2, window_bounds = array<i64: 8, 16, 16>}, {transform_indices = @transform_3, window_bounds = array<i64: 8, 32, 24>}]} {
    %c0 = arith.constant 0 : index
    %c0_0 = arith.constant 0 : index
    %c0_1 = arith.constant 0 : index
    %0 = vector.load %arg3[%c0, %c0_0, %c0_1] : memref<8x16x16xf32, #tpu.memory_space<vmem>>, vector<8x16x16xf32>
    %c0_2 = arith.constant 0 : index
    %c0_3 = arith.constant 0 : index
    %1 = vector.load %arg1[%c0_2, %c0_3] : memref<32x16xf32, #tpu.memory_space<vmem>>, vector<32x16xf32>
    %2 = vector.shape_cast %1 : vector<32x16xf32> to vector<1x32x16xf32>
    %3 = vector.broadcast %2 : vector<1x32x16xf32> to vector<8x32x16xf32>
    %c0_4 = arith.constant 0 : index
    %c0_5 = arith.constant 0 : index
    %4 = vector.load %arg2[%c0_4, %c0_5] : memref<16x24xf32, #tpu.memory_space<vmem>>, vector<16x24xf32>
    %5 = vector.shape_cast %4 : vector<16x24xf32> to vector<1x16x24xf32>
    %6 = vector.broadcast %5 : vector<1x16x24xf32> to vector<8x16x24xf32>
    "tpu.trace_start"() <{level = 10 : i32, message = "bhw,bwj->bhj"}> : () -> ()
    %cst = arith.constant dense<0.000000e+00> : vector<8x16x24xf32>
    %7 = tpu.matmul %0, %6, %cst {dimension_numbers = #tpu.dot_dimension_numbers<[2], [1], [1], [2], [0, 0, 0, 1, 1, 2], [0], [0]>} : vector<8x16x16xf32>, vector<8x16x24xf32>, vector<8x16x24xf32> -> vector<8x16x24xf32>
    "tpu.trace_stop"() : () -> ()
    "tpu.trace_start"() <{level = 10 : i32, message = "bih,bhj->bij"}> : () -> ()
    %cst_6 = arith.constant dense<0.000000e+00> : vector<8x32x24xf32>
    %8 = tpu.matmul %3, %7, %cst_6 {dimension_numbers = #tpu.dot_dimension_numbers<[2], [1], [1], [2], [0, 0, 0, 1, 1, 2], [0], [0]>} : vector<8x32x16xf32>, vector<8x16x24xf32>, vector<8x32x24xf32> -> vector<8x32x24xf32>
    "tpu.trace_stop"() : () -> ()
    %c0_7 = arith.constant 0 : index
    %c0_8 = arith.constant 0 : index
    %c0_9 = arith.constant 0 : index
    %9 = vector.load %arg4[%c0_7, %c0_8, %c0_9] : memref<8x32x24xf32, #tpu.memory_space<vmem>>, vector<8x32x24xf32>
    tpu.vector_store %arg4[%c0_7, %c0_8, %c0_9], %8 {strides = array<i32>} : memref<8x32x24xf32, #tpu.memory_space<vmem>>, vector<8x32x24xf32>,
    return
  }
  func.func @transform_0(%arg0: i32) -> (i32, i32) {
    %c0_i32 = arith.constant 0 : i32
    %c0_i32_0 = arith.constant 0 : i32
    %c0_i32_1 = arith.constant 0 : i32
    return %c0_i32, %c0_i32_0 : i32, i32
  }
  func.func @transform_1(%arg0: i32) -> (i32, i32) {
    %c0_i32 = arith.constant 0 : i32
    %c0_i32_0 = arith.constant 0 : i32
    %c0_i32_1 = arith.constant 0 : i32
    return %c0_i32, %c0_i32_0 : i32, i32
  }
  func.func @transform_2(%arg0: i32) -> (i32, i32, i32) {
    %c0_i32 = arith.constant 0 : i32
    %c0_i32_0 = arith.constant 0 : i32
    %c0_i32_1 = arith.constant 0 : i32
    return %arg0, %c0_i32, %c0_i32_0 : i32, i32, i32
  }
  func.func @transform_3(%arg0: i32) -> (i32, i32, i32) {
    %c0_i32 = arith.constant 0 : i32
    %c0_i32_0 = arith.constant 0 : i32
    %c0_i32_1 = arith.constant 0 : i32
    return %arg0, %c0_i32, %c0_i32_0 : i32, i32, i32
  }
}

</mosaic_0001>

<llo_original>
// kernel: upsample_bilinear.1
$region0: #{upsample_bilinear.1}
  #allocation0 [shape = 'u32[]', space=smem, size = 0x4, offset = 0x4, fixed_abs, tag = 'smem constant byte address 0x4 - core index']
  #allocation1 [shape = 'u32[144,128]{1,0:T(1,128)}', space=vmem, size = 0x12000, scoped, tag = 'internal scratch']
  %s0 = inlined_call_operand.hbm [shape: f32[32,16], index: 0, kind: input, shape index: {}]
  %s1 = inlined_call_operand.hbm [shape: f32[16,24], index: 1, kind: input, shape index: {}]
  %s2 = inlined_call_operand.hbm [shape: f32[8,16,16], index: 2, kind: input, shape index: {}]
  %s3 = inlined_call_operand.vmem [shape: f32[8,32,24], index: 3, kind: output, shape index: {}]
  %s4 = sld [smem:[#allocation0]]
  $region34: #{upsample_bilinear.1} parent=0
    _
  %s6 = ssub.s32 1, %s4
  %s7 = scalar_select 0, %s6, %s4
  $region1: #{upsample_bilinear.1} parent=0
    #allocation2 [shape = 'u8[16384]{0}', space=vmem, size = 0x4000, scoped, tag = 'input window, operand 0, single buffered']
    #allocation3 [shape = 's32[1]{0}', space=sflag, size = 0x4, scoped, tag = 'scoped memory for upsample_bilinear.1']
    #allocation4 [shape = 'u8[8192]{0}', space=vmem, size = 0x2000, scoped, tag = 'input window, operand 1, single buffered']
    #allocation5 [shape = 's32[1]{0}', space=sflag, size = 0x4, scoped, tag = 'scoped memory for upsample_bilinear.1']
    #allocation6 [shape = 'u8[65536]{0}', space=vmem, size = 0x10000, scoped, tag = 'input window, operand 2, single buffered']
    %8 = vsyncpa [#allocation3], 0
    %9 = vsyncpa [#allocation5], 0
    // Predicated region
    $region2: #{upsample_bilinear.1} parent=1 // pred_check
      _
    $region3: #{upsample_bilinear.1} parent=1 // pred_check_branch
      %11 = sbr.rel (0) target = $region5
    $region4: #{upsample_bilinear.1} parent=1 // pred_region
      %s13 = ssub.s32 512, 512
      %14 = vsyncadd [#allocation3], %s13
      %s15 = sshll.u32 [#allocation2], 4
      %s16 = int_to_ptr.vmem [resolvable:$true] %s15
      %21 = dma.hbm_to_vmem [thread:$0]  %s0, 512, %s16, [#allocation3], 128, 128, 8
    $region5: #{upsample_bilinear.1} parent=1 // pred_fallthru
      _
    // Predicated region
    $region6: #{upsample_bilinear.1} parent=1 // pred_check
      _
    $region7: #{upsample_bilinear.1} parent=1 // pred_check_branch
      %23 = sbr.rel (0) target = $region9
    $region8: #{upsample_bilinear.1} parent=1 // pred_region
      %s25 = ssub.s32 256, 256
      %26 = vsyncadd [#allocation5], %s25
      %s27 = sshll.u32 [#allocation4], 4
      %s28 = int_to_ptr.vmem [resolvable:$true] %s27
      %33 = dma.hbm_to_vmem [thread:$0]  %s1, 256, %s28, [#allocation5], 128, 128, 8
    $region9: #{upsample_bilinear.1} parent=1 // pred_fallthru
      _
    // Predicated region
    $region10: #{upsample_bilinear.1} parent=1 // pred_check
      _
    $region11: #{upsample_bilinear.1} parent=1 // pred_check_branch
      %35 = sbr.rel (0) target = $region13
    $region12: #{upsample_bilinear.1} parent=1 // pred_region
      %s37 = ssub.s32 2048, 2048
      %38 = vsyncadd [#allocation5], %s37
      %s39 = sshll.u32 [#allocation6], 4
      %s40 = int_to_ptr.vmem [resolvable:$true] %s39
      %45 = dma.hbm_to_vmem [thread:$0]  %s2, 2048, %s40, [#allocation5], 128, 128, 8
    $region13: #{upsample_bilinear.1} parent=1 // pred_fallthru
      _
    // Predicated region
    $region14: #{upsample_bilinear.1} parent=1 // pred_check
      _
    $region15: #{upsample_bilinear.1} parent=1 // pred_check_branch
      %47 = sbr.rel (0) target = $region17
    $region16: #{upsample_bilinear.1} parent=1 // pred_region
      %48 = dma.done [#allocation3], 512
    $region17: #{upsample_bilinear.1} parent=1 // pred_fallthru
      _
    // Predicated region
    $region18: #{upsample_bilinear.1} parent=1 // pred_check
      _
    $region19: #{upsample_bilinear.1} parent=1 // pred_check_branch
      %50 = sbr.rel (0) target = $region21
    $region20: #{upsample_bilinear.1} parent=1 // pred_region
      %51 = dma.done [#allocation5], 256
    $region21: #{upsample_bilinear.1} parent=1 // pred_fallthru
      _
    // Predicated region
    $region22: #{upsample_bilinear.1} parent=1 // pred_check
      _
    $region23: #{upsample_bilinear.1} parent=1 // pred_check_branch
      %53 = sbr.rel (0) target = $region25
    $region24: #{upsample_bilinear.1} parent=1 // pred_region
      %54 = dma.done [#allocation5], 2048
    $region25: #{upsample_bilinear.1} parent=1 // pred_fallthru
      _
    %v55 = vld [vmem:[#allocation6] sm:$0xff]
    %v56 = vld [vmem:[#allocation6 + $0x8] sm:$0xff]
    %v57 = vld [vmem:[#allocation6 + $0x10] sm:$0xff]
    %v58 = vld [vmem:[#allocation6 + $0x18] sm:$0xff]
    %v59 = vld [vmem:[#allocation6 + $0x20] sm:$0xff]
    %v60 = vld [vmem:[#allocation6 + $0x28] sm:$0xff]
    %v61 = vld [vmem:[#allocation6 + $0x30] sm:$0xff]
    %v62 = vld [vmem:[#allocation6 + $0x38] sm:$0xff]
    %v63 = vld [vmem:[#allocation6 + $0x40] sm:$0xff]
    %v64 = vld [vmem:[#allocation6 + $0x48] sm:$0xff]
    %v65 = vld [vmem:[#allocation6 + $0x50] sm:$0xff]
    %v66 = vld [vmem:[#allocation6 + $0x58] sm:$0xff]
    %v67 = vld [vmem:[#allocation6 + $0x60] sm:$0xff]
    %v68 = vld [vmem:[#allocation6 + $0x68] sm:$0xff]
    %v69 = vld [vmem:[#allocation6 + $0x70] sm:$0xff]
    %v70 = vld [vmem:[#allocation6 + $0x78] sm:$0xff]
    %v71 = vld [vmem:[#allocation2] sm:$0xff]
    %v72 = vld [vmem:[#allocation2 + $0x8] sm:$0xff]
    %v73 = vld [vmem:[#allocation2 + $0x10] sm:$0xff]
    %v74 = vld [vmem:[#allocation2 + $0x18] sm:$0xff]
    %v75 = vld [vmem:[#allocation4] sm:$0xff]
    %v76 = vld [vmem:[#allocation4 + $0x8] sm:$0xff]
    %vm77 = vcmask 130048
    %v79 = vsel %vm77, %v55, 0
    %v82 = vsel %vm77, %v56, 0
    %84 = vmatprep.subr.mxu0 0.0
    %85 = vmatpush1.msra.mxu0 %v75
    %86 = vmatprep.subr.mxu0 0.0
    %87 = vmatpush1.msra.mxu0 %v76
    %88 = vmatprep.subr.mxu0 0.0
    %89 = vmatpush1.msra.mxu0 0.0
    %90 = vmatprep.subr.mxu0 0.0
    %91 = vmatpush1.msra.mxu0 0.0
    %92 = vmatprep.subr.mxu0 0.0
    %93 = vmatpush1.msra.mxu0 0.0
    %94 = vmatprep.subr.mxu0 0.0
    %95 = vmatpush1.msra.mxu0 0.0
    %96 = vmatprep.subr.mxu0 0.0
    %97 = vmatpush1.msra.mxu0 0.0
    %98 = vmatprep.subr.mxu0 0.0
    %99 = vmatpush1.msra.mxu0 0.0
    %100 = vmatprep.subr.mxu0 0.0
    %101 = vmatpush1.msra.mxu0 0.0
    %102 = vmatprep.subr.mxu0 0.0
    %103 = vmatpush1.msra.mxu0 0.0
    %104 = vmatprep.subr.mxu0 0.0
    %105 = vmatpush1.msra.mxu0 0.0
    %106 = vmatprep.subr.mxu0 0.0
    %107 = vmatpush1.msra.mxu0 0.0
    %108 = vmatprep.subr.mxu0 0.0
    %109 = vmatpush1.msra.mxu0 0.0
    %110 = vmatprep.subr.mxu0 0.0
    %111 = vmatpush1.msra.mxu0 0.0
    %112 = vmatprep.subr.mxu0 0.0
    %113 = vmatpush1.msra.mxu0 0.0
    %114 = vmatprep.subr.mxu0 0.0
    %115 = vmatpush1.msra.mxu0 0.0
    %116 = vmatprep.subr.mxu0 0.0
    %117 = vmatpush1.msra.mxu0 0.0
    %118 = vmatprep.subr.mxu0 0.0
    %119 = vmatpush1.msra.mxu0 0.0
    %120 = vmatprep.subr.mxu0 0.0
    %121 = vmatpush1.msra.mxu0 0.0
    %122 = vmatprep.subr.mxu0 0.0
    %123 = vmatpush1.msra.mxu0 0.0
    %124 = vmatprep.subr.mxu0 0.0
    %125 = vmatpush1.msra.mxu0 0.0
    %126 = vmatprep.subr.mxu0 0.0
    %127 = vmatpush1.msra.mxu0 0.0
    %128 = vmatprep.subr.mxu0 0.0
    %129 = vmatpush1.msra.mxu0 0.0
    %130 = vmatprep.subr.mxu0 0.0
    %131 = vmatpush1.msra.mxu0 0.0
    %132 = vmatprep.subr.mxu0 0.0
    %133 = vmatpush1.msra.mxu0 0.0
    %134 = vmatprep.subr.mxu0 0.0
    %135 = vmatpush1.msra.mxu0 0.0
    %136 = vmatprep.subr.mxu0 0.0
    %137 = vmatpush1.msra.mxu0 0.0
    %138 = vmatprep.subr.mxu0 0.0
    %139 = vmatpush1.msra.mxu0 0.0
    %140 = vmatprep.subr.mxu0 0.0
    %141 = vmatpush1.msra.mxu0 0.0
    %142 = vmatprep.subr.mxu0 0.0
    %143 = vmatpush1.msra.mxu0 0.0
    %144 = vmatprep.subr.mxu0 0.0
    %145 = vmatpush1.msra.mxu0 0.0
    %146 = vmatprep.subr.mxu0 0.0
    %147 = vmatpush1.msra.mxu0 0.0
    %148 = vmatprep.mubr.f32.mxu0 0.0
    %149 = vmatmul.mubr.f32.gmra.mrb[0].mxu0 %v79
    %v150 = vpop.f32.mrb[0].mxu0
    %v151 = vadd.f32 0.0, %v150
    %v152 = vpop.f32.mrb[0].mxu0
    %153 = vmatprep.mubr.f32.mxu0 0.0
    %154 = vmatmul.mubr.f32.gmra.mrb[0].mxu0 %v82
    %v155 = vpop.f32.mrb[0].mxu0
    %v156 = vadd.f32 0.0, %v155
    %v157 = vpop.f32.mrb[0].mxu0
    %158 = vdwg.mxu0
    %v160 = vsel %vm77, %v57, 0
    %v163 = vsel %vm77, %v58, 0
    %165 = vmatprep.subr.mxu0 0.0
    %166 = vmatpush1.msra.mxu0 %v75
    %167 = vmatprep.subr.mxu0 0.0
    %168 = vmatpush1.msra.mxu0 %v76
    %169 = vmatprep.subr.mxu0 0.0
    %170 = vmatpush1.msra.mxu0 0.0
    %171 = vmatprep.subr.mxu0 0.0
    %172 = vmatpush1.msra.mxu0 0.0
    %173 = vmatprep.subr.mxu0 0.0
    %174 = vmatpush1.msra.mxu0 0.0
    %175 = vmatprep.subr.mxu0 0.0
    %176 = vmatpush1.msra.mxu0 0.0
    %177 = vmatprep.subr.mxu0 0.0
    %178 = vmatpush1.msra.mxu0 0.0
    %179 = vmatprep.subr.mxu0 0.0
    %180 = vmatpush1.msra.mxu0 0.0
    %181 = vmatprep.subr.mxu0 0.0
    %182 = vmatpush1.msra.mxu0 0.0
    %183 = vmatprep.subr.mxu0 0.0
    %184 = vmatpush1.msra.mxu0 0.0
    %185 = vmatprep.subr.mxu0 0.0
    %186 = vmatpush1.msra.mxu0 0.0
    %187 = vmatprep.subr.mxu0 0.0
    %188 = vmatpush1.msra.mxu0 0.0
    %189 = vmatprep.subr.mxu0 0.0
    %190 = vmatpush1.msra.mxu0 0.0
    %191 = vmatprep.subr.mxu0 0.0
    %192 = vmatpush1.msra.mxu0 0.0
    %193 = vmatprep.subr.mxu0 0.0
    %194 = vmatpush1.msra.mxu0 0.0
    %195 = vmatprep.subr.mxu0 0.0
    %196 = vmatpush1.msra.mxu0 0.0
    %197 = vmatprep.subr.mxu0 0.0
    %198 = vmatpush1.msra.mxu0 0.0
    %199 = vmatprep.subr.mxu0 0.0
    %200 = vmatpush1.msra.mxu0 0.0
    %201 = vmatprep.subr.mxu0 0.0
    %202 = vmatpush1.msra.mxu0 0.0
    %203 = vmatprep.subr.mxu0 0.0
    %204 = vmatpush1.msra.mxu0 0.0
    %205 = vmatprep.subr.mxu0 0.0
    %206 = vmatpush1.msra.mxu0 0.0
    %207 = vmatprep.subr.mxu0 0.0
    %208 = vmatpush1.msra.mxu0 0.0
    %209 = vmatprep.subr.mxu0 0.0
    %210 = vmatpush1.msra.mxu0 0.0
    %211 = vmatprep.subr.mxu0 0.0
    %212 = vmatpush1.msra.mxu0 0.0
    %213 = vmatprep.subr.mxu0 0.0
    %214 = vmatpush1.msra.mxu0 0.0
    %215 = vmatprep.subr.mxu0 0.0
    %216 = vmatpush1.msra.mxu0 0.0
    %217 = vmatprep.subr.mxu0 0.0
    %218 = vmatpush1.msra.mxu0 0.0
    %219 = vmatprep.subr.mxu0 0.0
    %220 = vmatpush1.msra.mxu0 0.0
    %221 = vmatprep.subr.mxu0 0.0
    %222 = vmatpush1.msra.mxu0 0.0
    %223 = vmatprep.subr.mxu0 0.0
    %224 = vmatpush1.msra.mxu0 0.0
    %225 = vmatprep.subr.mxu0 0.0
    %226 = vmatpush1.msra.mxu0 0.0
    %227 = vmatprep.subr.mxu0 0.0
    %228 = vmatpush1.msra.mxu0 0.0
    %229 = vmatprep.mubr.f32.mxu0 0.0
    %230 = vmatmul.mubr.f32.gmra.mrb[0].mxu0 %v160
    %v231 = vpop.f32.mrb[0].mxu0
    %v232 = vadd.f32 0.0, %v231
    %v233 = vpop.f32.mrb[0].mxu0
    %234 = vmatprep.mubr.f32.mxu0 0.0
    %235 = vmatmul.mubr.f32.gmra.mrb[0].mxu0 %v163
    %v236 = vpop.f32.mrb[0].mxu0
    %v237 = vadd.f32 0.0, %v236
    %v238 = vpop.f32.mrb[0].mxu0
    %239 = vdwg.mxu0
    %v241 = vsel %vm77, %v59, 0
    %v244 = vsel %vm77, %v60, 0
    %246 = vmatprep.subr.mxu0 0.0
    %247 = vmatpush1.msra.mxu0 %v75
    %248 = vmatprep.subr.mxu0 0.0
    %249 = vmatpush1.msra.mxu0 %v76
    %250 = vmatprep.subr.mxu0 0.0
    %251 = vmatpush1.msra.mxu0 0.0
    %252 = vmatprep.subr.mxu0 0.0
    %253 = vmatpush1.msra.mxu0 0.0
    %254 = vmatprep.subr.mxu0 0.0
    %255 = vmatpush1.msra.mxu0 0.0
    %256 = vmatprep.subr.mxu0 0.0
    %257 = vmatpush1.msra.mxu0 0.0
    %258 = vmatprep.subr.mxu0 0.0
    %259 = vmatpush1.msra.mxu0 0.0
    %260 = vmatprep.subr.mxu0 0.0
    %261 = vmatpush1.msra.mxu0 0.0
    %262 = vmatprep.subr.mxu0 0.0
    %263 = vmatpush1.msra.mxu0 0.0
    %264 = vmatprep.subr.mxu0 0.0
    %265 = vmatpush1.msra.mxu0 0.0
    %266 = vmatprep.subr.mxu0 0.0
    %267 = vmatpush1.msra.mxu0 0.0
    %268 = vmatprep.subr.mxu0 0.0
    %269 = vmatpush1.msra.mxu0 0.0
    %270 = vmatprep.subr.mxu0 0.0
    %271 = vmatpush1.msra.mxu0 0.0
    %272 = vmatprep.subr.mxu0 0.0
    %273 = vmatpush1.msra.mxu0 0.0
    %274 = vmatprep.subr.mxu0 0.0
    %275 = vmatpush1.msra.mxu0 0.0
    %276 = vmatprep.subr.mxu0 0.0
    %277 = vmatpush1.msra.mxu0 0.0
    %278 = vmatprep.subr.mxu0 0.0
    %279 = vmatpush1.msra.mxu0 0.0
    %280 = vmatprep.subr.mxu0 0.0
    %281 = vmatpush1.msra.mxu0 0.0
    %282 = vmatprep.subr.mxu0 0.0
    %283 = vmatpush1.msra.mxu0 0.0
    %284 = vmatprep.subr.mxu0 0.0
    %285 = vmatpush1.msra.mxu0 0.0
    %286 = vmatprep.subr.mxu0 0.0
    %287 = vmatpush1.msra.mxu0 0.0
    %288 = vmatprep.subr.mxu0 0.0
    %289 = vmatpush1.msra.mxu0 0.0
    %290 = vmatprep.subr.mxu0 0.0
    %291 = vmatpush1.msra.mxu0 0.0
    %292 = vmatprep.subr.mxu0 0.0
    %293 = vmatpush1.msra.mxu0 0.0
    %294 = vmatprep.subr.mxu0 0.0
    %295 = vmatpush1.msra.mxu0 0.0
    %296 = vmatprep.subr.mxu0 0.0
    %297 = vmatpush1.msra.mxu0 0.0
    %298 = vmatprep.subr.mxu0 0.0
    %299 = vmatpush1.msra.mxu0 0.0
    %300 = vmatprep.subr.mxu0 0.0
    %301 = vmatpush1.msra.mxu0 0.0
    %302 = vmatprep.subr.mxu0 0.0
    %303 = vmatpush1.msra.mxu0 0.0
    %304 = vmatprep.subr.mxu0 0.0
    %305 = vmatpush1.msra.mxu0 0.0
    %306 = vmatprep.subr.mxu0 0.0
    %307 = vmatpush1.msra.mxu0 0.0
    %308 = vmatprep.subr.mxu0 0.0
    %309 = vmatpush1.msra.mxu0 0.0
    %310 = vmatprep.mubr.f32.mxu0 0.0
    %311 = vmatmul.mubr.f32.gmra.mrb[0].mxu0 %v241
    %v312 = vpop.f32.mrb[0].mxu0
    %v313 = vadd.f32 0.0, %v312
    %v314 = vpop.f32.mrb[0].mxu0
    %315 = vmatprep.mubr.f32.mxu0 0.0
    %316 = vmatmul.mubr.f32.gmra.mrb[0].mxu0 %v244
    %v317 = vpop.f32.mrb[0].mxu0
    %v318 = vadd.f32 0.0, %v317
    %v319 = vpop.f32.mrb[0].mxu0
    %320 = vdwg.mxu0
    %v322 = vsel %vm77, %v61, 0
    %v325 = vsel %vm77, %v62, 0
    %327 = vmatprep.subr.mxu0 0.0
    %328 = vmatpush1.msra.mxu0 %v75
    %329 = vmatprep.subr.mxu0 0.0
    %330 = vmatpush1.msra.mxu0 %v76
    %331 = vmatprep.subr.mxu0 0.0
    %332 = vmatpush1.msra.mxu0 0.0
    %333 = vmatprep.subr.mxu0 0.0
    %334 = vmatpush1.msra.mxu0 0.0
    %335 = vmatprep.subr.mxu0 0.0
    %336 = vmatpush1.msra.mxu0 0.0
    %337 = vmatprep.subr.mxu0 0.0
    %338 = vmatpush1.msra.mxu0 0.0
    %339 = vmatprep.subr.mxu0 0.0
    %340 = vmatpush1.msra.mxu0 0.0
    %341 = vmatprep.subr.mxu0 0.0
    %342 = vmatpush1.msra.mxu0 0.0
    %343 = vmatprep.subr.mxu0 0.0
    %344 = vmatpush1.msra.mxu0 0.0
    %345 = vmatprep.subr.mxu0 0.0
    %346 = vmatpush1.msra.mxu0 0.0
    %347 = vmatprep.subr.mxu0 0.0
    %348 = vmatpush1.msra.mxu0 0.0
    %349 = vmatprep.subr.mxu0 0.0
    %350 = vmatpush1.msra.mxu0 0.0
    %351 = vmatprep.subr.mxu0 0.0
    %352 = vmatpush1.msra.mxu0 0.0
    %353 = vmatprep.subr.mxu0 0.0
    %354 = vmatpush1.msra.mxu0 0.0
    %355 = vmatprep.subr.mxu0 0.0
    %356 = vmatpush1.msra.mxu0 0.0
    %357 = vmatprep.subr.mxu0 0.0
    %358 = vmatpush1.msra.mxu0 0.0
    %359 = vmatprep.subr.mxu0 0.0
    %360 = vmatpush1.msra.mxu0 0.0
    %361 = vmatprep.subr.mxu0 0.0
    %362 = vmatpush1.msra.mxu0 0.0
    %363 = vmatprep.subr.mxu0 0.0
    %364 = vmatpush1.msra.mxu0 0.0
    %365 = vmatprep.subr.mxu0 0.0
    %366 = vmatpush1.msra.mxu0 0.0
    %367 = vmatprep.subr.mxu0 0.0
    %368 = vmatpush1.msra.mxu0 0.0
    %369 = vmatprep.subr.mxu0 0.0
    %370 = vmatpush1.msra.mxu0 0.0
    %371 = vmatprep.subr.mxu0 0.0
    %372 = vmatpush1.msra.mxu0 0.0
    %373 = vmatprep.subr.mxu0 0.0
    %374 = vmatpush1.msra.mxu0 0.0
    %375 = vmatprep.subr.mxu0 0.0
    %376 = vmatpush1.msra.mxu0 0.0
    %377 = vmatprep.subr.mxu0 0.0
    %378 = vmatpush1.msra.mxu0 0.0
    %379 = vmatprep.subr.mxu0 0.0
    %380 = vmatpush1.msra.mxu0 0.0
    %381 = vmatprep.subr.mxu0 0.0
    %382 = vmatpush1.msra.mxu0 0.0
    %383 = vmatprep.subr.mxu0 0.0
    %384 = vmatpush1.msra.mxu0 0.0
    %385 = vmatprep.subr.mxu0 0.0
    %386 = vmatpush1.msra.mxu0 0.0
    %387 = vmatprep.subr.mxu0 0.0
    %388 = vmatpush1.msra.mxu0 0.0
    %389 = vmatprep.subr.mxu0 0.0
    %390 = vmatpush1.msra.mxu0 0.0
    %391 = vmatprep.mubr.f32.mxu0 0.0
    %392 = vmatmul.mubr.f32.gmra.mrb[0].mxu0 %v322
    %v393 = vpop.f32.mrb[0].mxu0
    %v394 = vadd.f32 0.0, %v393
    %v395 = vpop.f32.mrb[0].mxu0
    %396 = vmatprep.mubr.f32.mxu0 0.0
    %397 = vmatmul.mubr.f32.gmra.mrb[0].mxu0 %v325
    %v398 = vpop.f32.mrb[0].mxu0
    %v399 = vadd.f32 0.0, %v398
    %v400 = vpop.f32.mrb[0].mxu0
    %401 = vdwg.mxu0
    %v403 = vsel %vm77, %v63, 0
    %v406 = vsel %vm77, %v64, 0
    %408 = vmatprep.subr.mxu0 0.0
    %409 = vmatpush1.msra.mxu0 %v75
    %410 = vmatprep.subr.mxu0 0.0
    %411 = vmatpush1.msra.mxu0 %v76
    %412 = vmatprep.subr.mxu0 0.0
    %413 = vmatpush1.msra.mxu0 0.0
    %414 = vmatprep.subr.mxu0 0.0
    %415 = vmatpush1.msra.mxu0 0.0
    %416 = vmatprep.subr.mxu0 0.0
    %417 = vmatpush1.msra.mxu0 0.0
    %418 = vmatprep.subr.mxu0 0.0
    %419 = vmatpush1.msra.mxu0 0.0
    %420 = vmatprep.subr.mxu0 0.0
    %421 = vmatpush1.msra.mxu0 0.0
    %422 = vmatprep.subr.mxu0 0.0
    %423 = vmatpush1.msra.mxu0 0.0
    %424 = vmatprep.subr.mxu0 0.0
    %425 = vmatpush1.msra.mxu0 0.0
    %426 = vmatprep.subr.mxu0 0.0
    %427 = vmatpush1.msra.mxu0 0.0
    %428 = vmatprep.subr.mxu0 0.0
    %429 = vmatpush1.msra.mxu0 0.0
    %430 = vmatprep.subr.mxu0 0.0
    %431 = vmatpush1.msra.mxu0 0.0
    %432 = vmatprep.subr.mxu0 0.0
    %433 = vmatpush1.msra.mxu0 0.0
    %434 = vmatprep.subr.mxu0 0.0
    %435 = vmatpush1.msra.mxu0 0.0
    %436 = vmatprep.subr.mxu0 0.0
    %437 = vmatpush1.msra.mxu0 0.0
    %438 = vmatprep.subr.mxu0 0.0
    %439 = vmatpush1.msra.mxu0 0.0
    %440 = vmatprep.subr.mxu0 0.0
    %441 = vmatpush1.msra.mxu0 0.0
    %442 = vmatprep.subr.mxu0 0.0
    %443 = vmatpush1.msra.mxu0 0.0
    %444 = vmatprep.subr.mxu0 0.0
    %445 = vmatpush1.msra.mxu0 0.0
    %446 = vmatprep.subr.mxu0 0.0
    %447 = vmatpush1.msra.mxu0 0.0
    %448 = vmatprep.subr.mxu0 0.0
    %449 = vmatpush1.msra.mxu0 0.0
    %450 = vmatprep.subr.mxu0 0.0
    %451 = vmatpush1.msra.mxu0 0.0
    %452 = vmatprep.subr.mxu0 0.0
    %453 = vmatpush1.msra.mxu0 0.0
    %454 = vmatprep.subr.mxu0 0.0
    %455 = vmatpush1.msra.mxu0 0.0
    %456 = vmatprep.subr.mxu0 0.0
    %457 = vmatpush1.msra.mxu0 0.0
    %458 = vmatprep.subr.mxu0 0.0
    %459 = vmatpush1.msra.mxu0 0.0
    %460 = vmatprep.subr.mxu0 0.0
    %461 = vmatpush1.msra.mxu0 0.0
    %462 = vmatprep.subr.mxu0 0.0
    %463 = vmatpush1.msra.mxu0 0.0
    %464 = vmatprep.subr.mxu0 0.0
    %465 = vmatpush1.msra.mxu0 0.0
    %466 = vmatprep.subr.mxu0 0.0
    %467 = vmatpush1.msra.mxu0 0.0
    %468 = vmatprep.subr.mxu0 0.0
    %469 = vmatpush1.msra.mxu0 0.0
    %470 = vmatprep.subr.mxu0 0.0
    %471 = vmatpush1.msra.mxu0 0.0
    %472 = vmatprep.mubr.f32.mxu0 0.0
    %473 = vmatmul.mubr.f32.gmra.mrb[0].mxu0 %v403
    %v474 = vpop.f32.mrb[0].mxu0
    %v475 = vadd.f32 0.0, %v474
    %v476 = vpop.f32.mrb[0].mxu0
    %477 = vmatprep.mubr.f32.mxu0 0.0
    %478 = vmatmul.mubr.f32.gmra.mrb[0].mxu0 %v406
    %v479 = vpop.f32.mrb[0].mxu0
    %v480 = vadd.f32 0.0, %v479
    %v481 = vpop.f32.mrb[0].mxu0
    %482 = vdwg.mxu0
    %v484 = vsel %vm77, %v65, 0
    %v487 = vsel %vm77, %v66, 0
    %489 = vmatprep.subr.mxu0 0.0
    %490 = vmatpush1.msra.mxu0 %v75
    %491 = vmatprep.subr.mxu0 0.0
    %492 = vmatpush1.msra.mxu0 %v76
    %493 = vmatprep.subr.mxu0 0.0
    %494 = vmatpush1.msra.mxu0 0.0
    %495 = vmatprep.subr.mxu0 0.0
    %496 = vmatpush1.msra.mxu0 0.0
    %497 = vmatprep.subr.mxu0 0.0
    %498 = vmatpush1.msra.mxu0 0.0
    %499 = vmatprep.subr.mxu0 0.0
    %500 = vmatpush1.msra.mxu0 0.0
    %501 = vmatprep.subr.mxu0 0.0
    %502 = vmatpush1.msra.mxu0 0.0
    %503 = vmatprep.subr.mxu0 0.0
    %504 = vmatpush1.msra.mxu0 0.0
    %505 = vmatprep.subr.mxu0 0.0
    %506 = vmatpush1.msra.mxu0 0.0
    %507 = vmatprep.subr.mxu0 0.0
    %508 = vmatpush1.msra.mxu0 0.0
    %509 = vmatprep.subr.mxu0 0.0
    %510 = vmatpush1.msra.mxu0 0.0
    %511 = vmatprep.subr.mxu0 0.0
    %512 = vmatpush1.msra.mxu0 0.0
    %513 = vmatprep.subr.mxu0 0.0
    %514 = vmatpush1.msra.mxu0 0.0
    %515 = vmatprep.subr.mxu0 0.0
    %516 = vmatpush1.msra.mxu0 0.0
    %517 = vmatprep.subr.mxu0 0.0
    %518 = vmatpush1.msra.mxu0 0.0
    %519 = vmatprep.subr.mxu0 0.0
    %520 = vmatpush1.msra.mxu0 0.0
    %521 = vmatprep.subr.mxu0 0.0
    %522 = vmatpush1.msra.mxu0 0.0
    %523 = vmatprep.subr.mxu0 0.0
    %524 = vmatpush1.msra.mxu0 0.0
    %525 = vmatprep.subr.mxu0 0.0
    %526 = vmatpush1.msra.mxu0 0.0
    %527 = vmatprep.subr.mxu0 0.0
    %528 = vmatpush1.msra.mxu0 0.0
    %529 = vmatprep.subr.mxu0 0.0
    %530 = vmatpush1.msra.mxu0 0.0
    %531 = vmatprep.subr.mxu0 0.0
    %532 = vmatpush1.msra.mxu0 0.0
    %533 = vmatprep.subr.mxu0 0.0
    %534 = vmatpush1.msra.mxu0 0.0
    %535 = vmatprep.subr.mxu0 0.0
    %536 = vmatpush1.msra.mxu0 0.0
    %537 = vmatprep.subr.mxu0 0.0
    %538 = vmatpush1.msra.mxu0 0.0
    %539 = vmatprep.subr.mxu0 0.0
    %540 = vmatpush1.msra.mxu0 0.0
    %541 = vmatprep.subr.mxu0 0.0
    %542 = vmatpush1.msra.mxu0 0.0
    %543 = vmatprep.subr.mxu0 0.0
    %544 = vmatpush1.msra.mxu0 0.0
    %545 = vmatprep.subr.mxu0 0.0
    %546 = vmatpush1.msra.mxu0 0.0
    %547 = vmatprep.subr.mxu0 0.0
    %548 = vmatpush1.msra.mxu0 0.0
    %549 = vmatprep.subr.mxu0 0.0
    %550 = vmatpush1.msra.mxu0 0.0
    %551 = vmatprep.subr.mxu0 0.0
    %552 = vmatpush1.msra.mxu0 0.0
    %553 = vmatprep.mubr.f32.mxu0 0.0
    %554 = vmatmul.mubr.f32.gmra.mrb[0].mxu0 %v484
    %v555 = vpop.f32.mrb[0].mxu0
    %v556 = vadd.f32 0.0, %v555
    %v557 = vpop.f32.mrb[0].mxu0
    %558 = vmatprep.mubr.f32.mxu0 0.0
    %559 = vmatmul.mubr.f32.gmra.mrb[0].mxu0 %v487
    %v560 = vpop.f32.mrb[0].mxu0
    %v561 = vadd.f32 0.0, %v560
    %v562 = vpop.f32.mrb[0].mxu0
    %563 = vdwg.mxu0
    %v565 = vsel %vm77, %v67, 0
    %v568 = vsel %vm77, %v68, 0
    %570 = vmatprep.subr.mxu0 0.0
    %571 = vmatpush1.msra.mxu0 %v75
    %572 = vmatprep.subr.mxu0 0.0
    %573 = vmatpush1.msra.mxu0 %v76
    %574 = vmatprep.subr.mxu0 0.0
    %575 = vmatpush1.msra.mxu0 0.0
    %576 = vmatprep.subr.mxu0 0.0
    %577 = vmatpush1.msra.mxu0 0.0
    %578 = vmatprep.subr.mxu0 0.0
    %579 = vmatpush1.msra.mxu0 0.0
    %580 = vmatprep.subr.mxu0 0.0
    %581 = vmatpush1.msra.mxu0 0.0
    %582 = vmatprep.subr.mxu0 0.0
    %583 = vmatpush1.msra.mxu0 0.0
    %584 = vmatprep.subr.mxu0 0.0
    %585 = vmatpush1.msra.mxu0 0.0
    %586 = vmatprep.subr.mxu0 0.0
    %587 = vmatpush1.msra.mxu0 0.0
    %588 = vmatprep.subr.mxu0 0.0
    %589 = vmatpush1.msra.mxu0 0.0
    %590 = vmatprep.subr.mxu0 0.0
    %591 = vmatpush1.msra.mxu0 0.0
    %592 = vmatprep.subr.mxu0 0.0
    %593 = vmatpush1.msra.mxu0 0.0
    %594 = vmatprep.subr.mxu0 0.0
    %595 = vmatpush1.msra.mxu0 0.0
    %596 = vmatprep.subr.mxu0 0.0
    %597 = vmatpush1.msra.mxu0 0.0
    %598 = vmatprep.subr.mxu0 0.0
    %599 = vmatpush1.msra.mxu0 0.0
    %600 = vmatprep.subr.mxu0 0.0
    %601 = vmatpush1.msra.mxu0 0.0
    %602 = vmatprep.subr.mxu0 0.0
    %603 = vmatpush1.msra.mxu0 0.0
    %604 = vmatprep.subr.mxu0 0.0
    %605 = vmatpush1.msra.mxu0 0.0
    %606 = vmatprep.subr.mxu0 0.0
    %607 = vmatpush1.msra.mxu0 0.0
    %608 = vmatprep.subr.mxu0 0.0
    %609 = vmatpush1.msra.mxu0 0.0
    %610 = vmatprep.subr.mxu0 0.0
    %611 = vmatpush1.msra.mxu0 0.0
    %612 = vmatprep.subr.mxu0 0.0
    %613 = vmatpush1.msra.mxu0 0.0
    %614 = vmatprep.subr.mxu0 0.0
    %615 = vmatpush1.msra.mxu0 0.0
    %616 = vmatprep.subr.mxu0 0.0
    %617 = vmatpush1.msra.mxu0 0.0
    %618 = vmatprep.subr.mxu0 0.0
    %619 = vmatpush1.msra.mxu0 0.0
    %620 = vmatprep.subr.mxu0 0.0
    %621 = vmatpush1.msra.mxu0 0.0
    %622 = vmatprep.subr.mxu0 0.0
    %623 = vmatpush1.msra.mxu0 0.0
    %624 = vmatprep.subr.mxu0 0.0
    %625 = vmatpush1.msra.mxu0 0.0
    %626 = vmatprep.subr.mxu0 0.0
    %627 = vmatpush1.msra.mxu0 0.0
    %628 = vmatprep.subr.mxu0 0.0
    %629 = vmatpush1.msra.mxu0 0.0
    %630 = vmatprep.subr.mxu0 0.0
    %631 = vmatpush1.msra.mxu0 0.0
    %632 = vmatprep.subr.mxu0 0.0
    %633 = vmatpush1.msra.mxu0 0.0
    %634 = vmatprep.mubr.f32.mxu0 0.0
    %635 = vmatmul.mubr.f32.gmra.mrb[0].mxu0 %v565
    %v636 = vpop.f32.mrb[0].mxu0
    %v637 = vadd.f32 0.0, %v636
    %v638 = vpop.f32.mrb[0].mxu0
    %639 = vmatprep.mubr.f32.mxu0 0.0
    %640 = vmatmul.mubr.f32.gmra.mrb[0].mxu0 %v568
    %v641 = vpop.f32.mrb[0].mxu0
    %v642 = vadd.f32 0.0, %v641
    %v643 = vpop.f32.mrb[0].mxu0
    %644 = vdwg.mxu0
    %v646 = vsel %vm77, %v69, 0
    %v649 = vsel %vm77, %v70, 0
    %651 = vmatprep.subr.mxu0 0.0
    %652 = vmatpush1.msra.mxu0 %v75
    %653 = vmatprep.subr.mxu0 0.0
    %654 = vmatpush1.msra.mxu0 %v76
    %655 = vmatprep.subr.mxu0 0.0
    %656 = vmatpush1.msra.mxu0 0.0
    %657 = vmatprep.subr.mxu0 0.0
    %658 = vmatpush1.msra.mxu0 0.0
    %659 = vmatprep.subr.mxu0 0.0
    %660 = vmatpush1.msra.mxu0 0.0
    %661 = vmatprep.subr.mxu0 0.0
    %662 = vmatpush1.msra.mxu0 0.0
    %663 = vmatprep.subr.mxu0 0.0
    %664 = vmatpush1.msra.mxu0 0.0
    %665 = vmatprep.subr.mxu0 0.0
    %666 = vmatpush1.msra.mxu0 0.0
    %667 = vmatprep.subr.mxu0 0.0
    %668 = vmatpush1.msra.mxu0 0.0
    %669 = vmatprep.subr.mxu0 0.0
    %670 = vmatpush1.msra.mxu0 0.0
    %671 = vmatprep.subr.mxu0 0.0
    %672 = vmatpush1.msra.mxu0 0.0
    %673 = vmatprep.subr.mxu0 0.0
    %674 = vmatpush1.msra.mxu0 0.0
    %675 = vmatprep.subr.mxu0 0.0
    %676 = vmatpush1.msra.mxu0 0.0
    %677 = vmatprep.subr.mxu0 0.0
    %678 = vmatpush1.msra.mxu0 0.0
    %679 = vmatprep.subr.mxu0 0.0
    %680 = vmatpush1.msra.mxu0 0.0
    %681 = vmatprep.subr.mxu0 0.0
    %682 = vmatpush1.msra.mxu0 0.0
    %683 = vmatprep.subr.mxu0 0.0
    %684 = vmatpush1.msra.mxu0 0.0
    %685 = vmatprep.subr.mxu0 0.0
    %686 = vmatpush1.msra.mxu0 0.0
    %687 = vmatprep.subr.mxu0 0.0
    %688 = vmatpush1.msra.mxu0 0.0
    %689 = vmatprep.subr.mxu0 0.0
    %690 = vmatpush1.msra.mxu0 0.0
    %691 = vmatprep.subr.mxu0 0.0
    %692 = vmatpush1.msra.mxu0 0.0
    %693 = vmatprep.subr.mxu0 0.0
    %694 = vmatpush1.msra.mxu0 0.0
    %695 = vmatprep.subr.mxu0 0.0
    %696 = vmatpush1.msra.mxu0 0.0
    %697 = vmatprep.subr.mxu0 0.0
    %698 = vmatpush1.msra.mxu0 0.0
    %699 = vmatprep.subr.mxu0 0.0
    %700 = vmatpush1.msra.mxu0 0.0
    %701 = vmatprep.subr.mxu0 0.0
    %702 = vmatpush1.msra.mxu0 0.0
    %703 = vmatprep.subr.mxu0 0.0
    %704 = vmatpush1.msra.mxu0 0.0
    %705 = vmatprep.subr.mxu0 0.0
    %706 = vmatpush1.msra.mxu0 0.0
    %707 = vmatprep.subr.mxu0 0.0
    %708 = vmatpush1.msra.mxu0 0.0
    %709 = vmatprep.subr.mxu0 0.0
    %710 = vmatpush1.msra.mxu0 0.0
    %711 = vmatprep.subr.mxu0 0.0
    %712 = vmatpush1.msra.mxu0 0.0
    %713 = vmatprep.subr.mxu0 0.0
    %714 = vmatpush1.msra.mxu0 0.0
    %715 = vmatprep.mubr.f32.mxu0 0.0
    %716 = vmatmul.mubr.f32.gmra.mrb[0].mxu0 %v646
    %v717 = vpop.f32.mrb[0].mxu0
    %v718 = vadd.f32 0.0, %v717
    %v719 = vpop.f32.mrb[0].mxu0
    %720 = vmatprep.mubr.f32.mxu0 0.0
    %721 = vmatmul.mubr.f32.gmra.mrb[0].mxu0 %v649
    %v722 = vpop.f32.mrb[0].mxu0
    %v723 = vadd.f32 0.0, %v722
    %v724 = vpop.f32.mrb[0].mxu0
    %725 = vdwg.mxu0
    %v727 = vsel %vm77, %v71, 0
    %v730 = vsel %vm77, %v72, 0
    %v733 = vsel %vm77, %v73, 0
    %v736 = vsel %vm77, %v74, 0
    %738 = vmatprep.subr.mxu0 0.0
    %739 = vmatpush1.msra.mxu0 %v151
    %740 = vmatprep.subr.mxu0 0.0
    %741 = vmatpush1.msra.mxu0 %v156
    %742 = vmatprep.subr.mxu0 0.0
    %743 = vmatpush1.msra.mxu0 0.0
    %744 = vmatprep.subr.mxu0 0.0
    %745 = vmatpush1.msra.mxu0 0.0
    %746 = vmatprep.subr.mxu0 0.0
    %747 = vmatpush1.msra.mxu0 0.0
    %748 = vmatprep.subr.mxu0 0.0
    %749 = vmatpush1.msra.mxu0 0.0
    %750 = vmatprep.subr.mxu0 0.0
    %751 = vmatpush1.msra.mxu0 0.0
    %752 = vmatprep.subr.mxu0 0.0
    %753 = vmatpush1.msra.mxu0 0.0
    %754 = vmatprep.subr.mxu0 0.0
    %755 = vmatpush1.msra.mxu0 0.0
    %756 = vmatprep.subr.mxu0 0.0
    %757 = vmatpush1.msra.mxu0 0.0
    %758 = vmatprep.subr.mxu0 0.0
    %759 = vmatpush1.msra.mxu0 0.0
    %760 = vmatprep.subr.mxu0 0.0
    %761 = vmatpush1.msra.mxu0 0.0
    %762 = vmatprep.subr.mxu0 0.0
    %763 = vmatpush1.msra.mxu0 0.0
    %764 = vmatprep.subr.mxu0 0.0
    %765 = vmatpush1.msra.mxu0 0.0
    %766 = vmatprep.subr.mxu0 0.0
    %767 = vmatpush1.msra.mxu0 0.0
    %768 = vmatprep.subr.mxu0 0.0
    %769 = vmatpush1.msra.mxu0 0.0
    %770 = vmatprep.subr.mxu0 0.0
    %771 = vmatpush1.msra.mxu0 0.0
    %772 = vmatprep.subr.mxu0 0.0
    %773 = vmatpush1.msra.mxu0 0.0
    %774 = vmatprep.subr.mxu0 0.0
    %775 = vmatpush1.msra.mxu0 0.0
    %776 = vmatprep.subr.mxu0 0.0
    %777 = vmatpush1.msra.mxu0 0.0
    %778 = vmatprep.subr.mxu0 0.0
    %779 = vmatpush1.msra.mxu0 0.0
    %780 = vmatprep.subr.mxu0 0.0
    %781 = vmatpush1.msra.mxu0 0.0
    %782 = vmatprep.subr.mxu0 0.0
    %783 = vmatpush1.msra.mxu0 0.0
    %784 = vmatprep.subr.mxu0 0.0
    %785 = vmatpush1.msra.mxu0 0.0
    %786 = vmatprep.subr.mxu0 0.0
    %787 = vmatpush1.msra.mxu0 0.0
    %788 = vmatprep.subr.mxu0 0.0
    %789 = vmatpush1.msra.mxu0 0.0
    %790 = vmatprep.subr.mxu0 0.0
    %791 = vmatpush1.msra.mxu0 0.0
    %792 = vmatprep.subr.mxu0 0.0
    %793 = vmatpush1.msra.mxu0 0.0
    %794 = vmatprep.subr.mxu0 0.0
    %795 = vmatpush1.msra.mxu0 0.0
    %796 = vmatprep.subr.mxu0 0.0
    %797 = vmatpush1.msra.mxu0 0.0
    %798 = vmatprep.subr.mxu0 0.0
    %799 = vmatpush1.msra.mxu0 0.0
    %800 = vmatprep.subr.mxu0 0.0
    %801 = vmatpush1.msra.mxu0 0.0
    %802 = vmatprep.mubr.f32.mxu0 0.0
    %803 = vmatmul.mubr.f32.gmra.mrb[0].mxu0 %v727
    %v804 = vpop.f32.mrb[0].mxu0
    %v805 = vadd.f32 0.0, %v804
    %v806 = vpop.f32.mrb[0].mxu0
    %807 = vmatprep.mubr.f32.mxu0 0.0
    %808 = vmatmul.mubr.f32.gmra.mrb[0].mxu0 %v730
    %v809 = vpop.f32.mrb[0].mxu0
    %v810 = vadd.f32 0.0, %v809
    %v811 = vpop.f32.mrb[0].mxu0
    %812 = vmatprep.mubr.f32.mxu0 0.0
    %813 = vmatmul.mubr.f32.gmra.mrb[0].mxu0 %v733
    %v814 = vpop.f32.mrb[0].mxu0
    %v815 = vadd.f32 0.0, %v814
    %v816 = vpop.f32.mrb[0].mxu0
    %817 = vmatprep.mubr.f32.mxu0 0.0
    %818 = vmatmul.mubr.f32.gmra.mrb[0].mxu0 %v736
    %v819 = vpop.f32.mrb[0].mxu0
    %v820 = vadd.f32 0.0, %v819
    %v821 = vpop.f32.mrb[0].mxu0
    %822 = vdwg.mxu0
    %823 = vmatprep.subr.mxu0 0.0
    %824 = vmatpush1.msra.mxu0 %v232
    %825 = vmatprep.subr.mxu0 0.0
    %826 = vmatpush1.msra.mxu0 %v237
    %827 = vmatprep.subr.mxu0 0.0
    %828 = vmatpush1.msra.mxu0 0.0
    %829 = vmatprep.subr.mxu0 0.0
    %830 = vmatpush1.msra.mxu0 0.0
    %831 = vmatprep.subr.mxu0 0.0
    %832 = vmatpush1.msra.mxu0 0.0
    %833 = vmatprep.subr.mxu0 0.0
    %834 = vmatpush1.msra.mxu0 0.0
    %835 = vmatprep.subr.mxu0 0.0
    %836 = vmatpush1.msra.mxu0 0.0
    %837 = vmatprep.subr.mxu0 0.0
    %838 = vmatpush1.msra.mxu0 0.0
    %839 = vmatprep.subr.mxu0 0.0
    %840 = vmatpush1.msra.mxu0 0.0
    %841 = vmatprep.subr.mxu0 0.0
    %842 = vmatpush1.msra.mxu0 0.0
    %843 = vmatprep.subr.mxu0 0.0
    %844 = vmatpush1.msra.mxu0 0.0
    %845 = vmatprep.subr.mxu0 0.0
    %846 = vmatpush1.msra.mxu0 0.0
    %847 = vmatprep.subr.mxu0 0.0
    %848 = vmatpush1.msra.mxu0 0.0
    %849 = vmatprep.subr.mxu0 0.0
    %850 = vmatpush1.msra.mxu0 0.0
    %851 = vmatprep.subr.mxu0 0.0
    %852 = vmatpush1.msra.mxu0 0.0
    %853 = vmatprep.subr.mxu0 0.0
    %854 = vmatpush1.msra.mxu0 0.0
    %855 = vmatprep.subr.mxu0 0.0
    %856 = vmatpush1.msra.mxu0 0.0
    %857 = vmatprep.subr.mxu0 0.0
    %858 = vmatpush1.msra.mxu0 0.0
    %859 = vmatprep.subr.mxu0 0.0
    %860 = vmatpush1.msra.mxu0 0.0
    %861 = vmatprep.subr.mxu0 0.0
    %862 = vmatpush1.msra.mxu0 0.0
    %863 = vmatprep.subr.mxu0 0.0
    %864 = vmatpush1.msra.mxu0 0.0
    %865 = vmatprep.subr.mxu0 0.0
    %866 = vmatpush1.msra.mxu0 0.0
    %867 = vmatprep.subr.mxu0 0.0
    %868 = vmatpush1.msra.mxu0 0.0
    %869 = vmatprep.subr.mxu0 0.0
    %870 = vmatpush1.msra.mxu0 0.0
    %871 = vmatprep.subr.mxu0 0.0
    %872 = vmatpush1.msra.mxu0 0.0
    %873 = vmatprep.subr.mxu0 0.0
    %874 = vmatpush1.msra.mxu0 0.0
    %875 = vmatprep.subr.mxu0 0.0
    %876 = vmatpush1.msra.mxu0 0.0
    %877 = vmatprep.subr.mxu0 0.0
    %878 = vmatpush1.msra.mxu0 0.0
    %879 = vmatprep.subr.mxu0 0.0
    %880 = vmatpush1.msra.mxu0 0.0
    %881 = vmatprep.subr.mxu0 0.0
    %882 = vmatpush1.msra.mxu0 0.0
    %883 = vmatprep.subr.mxu0 0.0
    %884 = vmatpush1.msra.mxu0 0.0
    %885 = vmatprep.subr.mxu0 0.0
    %886 = vmatpush1.msra.mxu0 0.0
    %887 = vmatprep.mubr.f32.mxu0 0.0
    %888 = vmatmul.mubr.f32.gmra.mrb[0].mxu0 %v727
    %v889 = vpop.f32.mrb[0].mxu0
    %v890 = vadd.f32 0.0, %v889
    %v891 = vpop.f32.mrb[0].mxu0
    %892 = vmatprep.mubr.f32.mxu0 0.0
    %893 = vmatmul.mubr.f32.gmra.mrb[0].mxu0 %v730
    %v894 = vpop.f32.mrb[0].mxu0
    %v895 = vadd.f32 0.0, %v894
    %v896 = vpop.f32.mrb[0].mxu0
    %897 = vmatprep.mubr.f32.mxu0 0.0
    %898 = vmatmul.mubr.f32.gmra.mrb[0].mxu0 %v733
    %v899 = vpop.f32.mrb[0].mxu0
    %v900 = vadd.f32 0.0, %v899
    %v901 = vpop.f32.mrb[0].mxu0
    %902 = vmatprep.mubr.f32.mxu0 0.0
    %903 = vmatmul.mubr.f32.gmra.mrb[0].mxu0 %v736
    %v904 = vpop.f32.mrb[0].mxu0
    %v905 = vadd.f32 0.0, %v904
    %v906 = vpop.f32.mrb[0].mxu0
    %907 = vdwg.mxu0
    %908 = vmatprep.subr.mxu0 0.0
    %909 = vmatpush1.msra.mxu0 %v313
    %910 = vmatprep.subr.mxu0 0.0
    %911 = vmatpush1.msra.mxu0 %v318
    %912 = vmatprep.subr.mxu0 0.0
    %913 = vmatpush1.msra.mxu0 0.0
    %914 = vmatprep.subr.mxu0 0.0
    %915 = vmatpush1.msra.mxu0 0.0
    %916 = vmatprep.subr.mxu0 0.0
    %917 = vmatpush1.msra.mxu0 0.0
    %918 = vmatprep.subr.mxu0 0.0
    %919 = vmatpush1.msra.mxu0 0.0
    %920 = vmatprep.subr.mxu0 0.0
    %921 = vmatpush1.msra.mxu0 0.0
    %922 = vmatprep.subr.mxu0 0.0
    %923 = vmatpush1.msra.mxu0 0.0
    %924 = vmatprep.subr.mxu0 0.0
    %925 = vmatpush1.msra.mxu0 0.0
    %926 = vmatprep.subr.mxu0 0.0
    %927 = vmatpush1.msra.mxu0 0.0
    %928 = vmatprep.subr.mxu0 0.0
    %929 = vmatpush1.msra.mxu0 0.0
    %930 = vmatprep.subr.mxu0 0.0
    %931 = vmatpush1.msra.mxu0 0.0
    %932 = vmatprep.subr.mxu0 0.0
    %933 = vmatpush1.msra.mxu0 0.0
    %934 = vmatprep.subr.mxu0 0.0
    %935 = vmatpush1.msra.mxu0 0.0
    %936 = vmatprep.subr.mxu0 0.0
    %937 = vmatpush1.msra.mxu0 0.0
    %938 = vmatprep.subr.mxu0 0.0
    %939 = vmatpush1.msra.mxu0 0.0
    %940 = vmatprep.subr.mxu0 0.0
    %941 = vmatpush1.msra.mxu0 0.0
    %942 = vmatprep.subr.mxu0 0.0
    %943 = vmatpush1.msra.mxu0 0.0
    %944 = vmatprep.subr.mxu0 0.0
    %945 = vmatpush1.msra.mxu0 0.0
    %946 = vmatprep.subr.mxu0 0.0
    %947 = vmatpush1.msra.mxu0 0.0
    %948 = vmatprep.subr.mxu0 0.0
    %949 = vmatpush1.msra.mxu0 0.0
    %950 = vmatprep.subr.mxu0 0.0
    %951 = vmatpush1.msra.mxu0 0.0
    %952 = vmatprep.subr.mxu0 0.0
    %953 = vmatpush1.msra.mxu0 0.0
    %954 = vmatprep.subr.mxu0 0.0
    %955 = vmatpush1.msra.mxu0 0.0
    %956 = vmatprep.subr.mxu0 0.0
    %957 = vmatpush1.msra.mxu0 0.0
    %958 = vmatprep.subr.mxu0 0.0
    %959 = vmatpush1.msra.mxu0 0.0
    %960 = vmatprep.subr.mxu0 0.0
    %961 = vmatpush1.msra.mxu0 0.0
    %962 = vmatprep.subr.mxu0 0.0
    %963 = vmatpush1.msra.mxu0 0.0
    %964 = vmatprep.subr.mxu0 0.0
    %965 = vmatpush1.msra.mxu0 0.0
    %966 = vmatprep.subr.mxu0 0.0
    %967 = vmatpush1.msra.mxu0 0.0
    %968 = vmatprep.subr.mxu0 0.0
    %969 = vmatpush1.msra.mxu0 0.0
    %970 = vmatprep.subr.mxu0 0.0
    %971 = vmatpush1.msra.mxu0 0.0
    %972 = vmatprep.mubr.f32.mxu0 0.0
    %973 = vmatmul.mubr.f32.gmra.mrb[0].mxu0 %v727
    %v974 = vpop.f32.mrb[0].mxu0
    %v975 = vadd.f32 0.0, %v974
    %v976 = vpop.f32.mrb[0].mxu0
    %977 = vmatprep.mubr.f32.mxu0 0.0
    %978 = vmatmul.mubr.f32.gmra.mrb[0].mxu0 %v730
    %v979 = vpop.f32.mrb[0].mxu0
    %v980 = vadd.f32 0.0, %v979
    %v981 = vpop.f32.mrb[0].mxu0
    %982 = vmatprep.mubr.f32.mxu0 0.0
    %983 = vmatmul.mubr.f32.gmra.mrb[0].mxu0 %v733
    %v984 = vpop.f32.mrb[0].mxu0
    %v985 = vadd.f32 0.0, %v984
    %v986 = vpop.f32.mrb[0].mxu0
    %987 = vmatprep.mubr.f32.mxu0 0.0
    %988 = vmatmul.mubr.f32.gmra.mrb[0].mxu0 %v736
    %v989 = vpop.f32.mrb[0].mxu0
    %v990 = vadd.f32 0.0, %v989
    %v991 = vpop.f32.mrb[0].mxu0
    %992 = vdwg.mxu0
    %993 = vmatprep.subr.mxu0 0.0
    %994 = vmatpush1.msra.mxu0 %v394
    %995 = vmatprep.subr.mxu0 0.0
    %996 = vmatpush1.msra.mxu0 %v399
    %997 = vmatprep.subr.mxu0 0.0
    %998 = vmatpush1.msra.mxu0 0.0
    %999 = vmatprep.subr.mxu0 0.0
    %1000 = vmatpush1.msra.mxu0 0.0
    %1001 = vmatprep.subr.mxu0 0.0
    %1002 = vmatpush1.msra.mxu0 0.0
    %1003 = vmatprep.subr.mxu0 0.0
    %1004 = vmatpush1.msra.mxu0 0.0
    %1005 = vmatprep.subr.mxu0 0.0
    %1006 = vmatpush1.msra.mxu0 0.0
    %1007 = vmatprep.subr.mxu0 0.0
    %1008 = vmatpush1.msra.mxu0 0.0
    %1009 = vmatprep.subr.mxu0 0.0
    %1010 = vmatpush1.msra.mxu0 0.0
    %1011 = vmatprep.subr.mxu0 0.0
    %1012 = vmatpush1.msra.mxu0 0.0
    %1013 = vmatprep.subr.mxu0 0.0
    %1014 = vmatpush1.msra.mxu0 0.0
    %1015 = vmatprep.subr.mxu0 0.0
    %1016 = vmatpush1.msra.mxu0 0.0
    %1017 = vmatprep.subr.mxu0 0.0
    %1018 = vmatpush1.msra.mxu0 0.0
    %1019 = vmatprep.subr.mxu0 0.0
    %1020 = vmatpush1.msra.mxu0 0.0
    %1021 = vmatprep.subr.mxu0 0.0
    %1022 = vmatpush1.msra.mxu0 0.0
    %1023 = vmatprep.subr.mxu0 0.0
    %1024 = vmatpush1.msra.mxu0 0.0
    %1025 = vmatprep.subr.mxu0 0.0
    %1026 = vmatpush1.msra.mxu0 0.0
    %1027 = vmatprep.subr.mxu0 0.0
    %1028 = vmatpush1.msra.mxu0 0.0
    %1029 = vmatprep.subr.mxu0 0.0
    %1030 = vmatpush1.msra.mxu0 0.0
    %1031 = vmatprep.subr.mxu0 0.0
    %1032 = vmatpush1.msra.mxu0 0.0
    %1033 = vmatprep.subr.mxu0 0.0
    %1034 = vmatpush1.msra.mxu0 0.0
    %1035 = vmatprep.subr.mxu0 0.0
    %1036 = vmatpush1.msra.mxu0 0.0
    %1037 = vmatprep.subr.mxu0 0.0
    %1038 = vmatpush1.msra.mxu0 0.0
    %1039 = vmatprep.subr.mxu0 0.0
    %1040 = vmatpush1.msra.mxu0 0.0
    %1041 = vmatprep.subr.mxu0 0.0
    %1042 = vmatpush1.msra.mxu0 0.0
    %1043 = vmatprep.subr.mxu0 0.0
    %1044 = vmatpush1.msra.mxu0 0.0
    %1045 = vmatprep.subr.mxu0 0.0
    %1046 = vmatpush1.msra.mxu0 0.0
    %1047 = vmatprep.subr.mxu0 0.0
    %1048 = vmatpush1.msra.mxu0 0.0
    %1049 = vmatprep.subr.mxu0 0.0
    %1050 = vmatpush1.msra.mxu0 0.0
    %1051 = vmatprep.subr.mxu0 0.0
    %1052 = vmatpush1.msra.mxu0 0.0
    %1053 = vmatprep.subr.mxu0 0.0
    %1054 = vmatpush1.msra.mxu0 0.0
    %1055 = vmatprep.subr.mxu0 0.0
    %1056 = vmatpush1.msra.mxu0 0.0
    %1057 = vmatprep.mubr.f32.mxu0 0.0
    %1058 = vmatmul.mubr.f32.gmra.mrb[0].mxu0 %v727
    %v1059 = vpop.f32.mrb[0].mxu0
    %v1060 = vadd.f32 0.0, %v1059
    %v1061 = vpop.f32.mrb[0].mxu0
    %1062 = vmatprep.mubr.f32.mxu0 0.0
    %1063 = vmatmul.mubr.f32.gmra.mrb[0].mxu0 %v730
    %v1064 = vpop.f32.mrb[0].mxu0
    %v1065 = vadd.f32 0.0, %v1064
    %v1066 = vpop.f32.mrb[0].mxu0
    %1067 = vmatprep.mubr.f32.mxu0 0.0
    %1068 = vmatmul.mubr.f32.gmra.mrb[0].mxu0 %v733
    %v1069 = vpop.f32.mrb[0].mxu0
    %v1070 = vadd.f32 0.0, %v1069
    %v1071 = vpop.f32.mrb[0].mxu0
    %1072 = vmatprep.mubr.f32.mxu0 0.0
    %1073 = vmatmul.mubr.f32.gmra.mrb[0].mxu0 %v736
    %v1074 = vpop.f32.mrb[0].mxu0
    %v1075 = vadd.f32 0.0, %v1074
    %v1076 = vpop.f32.mrb[0].mxu0
    %1077 = vdwg.mxu0
    %1078 = vmatprep.subr.mxu0 0.0
    %1079 = vmatpush1.msra.mxu0 %v475
    %1080 = vmatprep.subr.mxu0 0.0
    %1081 = vmatpush1.msra.mxu0 %v480
    %1082 = vmatprep.subr.mxu0 0.0
    %1083 = vmatpush1.msra.mxu0 0.0
    %1084 = vmatprep.subr.mxu0 0.0
    %1085 = vmatpush1.msra.mxu0 0.0
    %1086 = vmatprep.subr.mxu0 0.0
    %1087 = vmatpush1.msra.mxu0 0.0
    %1088 = vmatprep.subr.mxu0 0.0
    %1089 = vmatpush1.msra.mxu0 0.0
    %1090 = vmatprep.subr.mxu0 0.0
    %1091 = vmatpush1.msra.mxu0 0.0
    %1092 = vmatprep.subr.mxu0 0.0
    %1093 = vmatpush1.msra.mxu0 0.0
    %1094 = vmatprep.subr.mxu0 0.0
    %1095 = vmatpush1.msra.mxu0 0.0
    %1096 = vmatprep.subr.mxu0 0.0
    %1097 = vmatpush1.msra.mxu0 0.0
    %1098 = vmatprep.subr.mxu0 0.0
    %1099 = vmatpush1.msra.mxu0 0.0
    %1100 = vmatprep.subr.mxu0 0.0
    %1101 = vmatpush1.msra.mxu0 0.0
    %1102 = vmatprep.subr.mxu0 0.0
    %1103 = vmatpush1.msra.mxu0 0.0
    %1104 = vmatprep.subr.mxu0 0.0
    %1105 = vmatpush1.msra.mxu0 0.0
    %1106 = vmatprep.subr.mxu0 0.0
    %1107 = vmatpush1.msra.mxu0 0.0
    %1108 = vmatprep.subr.mxu0 0.0
    %1109 = vmatpush1.msra.mxu0 0.0
    %1110 = vmatprep.subr.mxu0 0.0
    %1111 = vmatpush1.msra.mxu0 0.0
    %1112 = vmatprep.subr.mxu0 0.0
    %1113 = vmatpush1.msra.mxu0 0.0
    %1114 = vmatprep.subr.mxu0 0.0
    %1115 = vmatpush1.msra.mxu0 0.0
    %1116 = vmatprep.subr.mxu0 0.0
    %1117 = vmatpush1.msra.mxu0 0.0
    %1118 = vmatprep.subr.mxu0 0.0
    %1119 = vmatpush1.msra.mxu0 0.0
    %1120 = vmatprep.subr.mxu0 0.0
    %1121 = vmatpush1.msra.mxu0 0.0
    %1122 = vmatprep.subr.mxu0 0.0
    %1123 = vmatpush1.msra.mxu0 0.0
    %1124 = vmatprep.subr.mxu0 0.0
    %1125 = vmatpush1.msra.mxu0 0.0
    %1126 = vmatprep.subr.mxu0 0.0
    %1127 = vmatpush1.msra.mxu0 0.0
    %1128 = vmatprep.subr.mxu0 0.0
    %1129 = vmatpush1.msra.mxu0 0.0
    %1130 = vmatprep.subr.mxu0 0.0
    %1131 = vmatpush1.msra.mxu0 0.0
    %1132 = vmatprep.subr.mxu0 0.0
    %1133 = vmatpush1.msra.mxu0 0.0
    %1134 = vmatprep.subr.mxu0 0.0
    %1135 = vmatpush1.msra.mxu0 0.0
    %1136 = vmatprep.subr.mxu0 0.0
    %1137 = vmatpush1.msra.mxu0 0.0
    %1138 = vmatprep.subr.mxu0 0.0
    %1139 = vmatpush1.msra.mxu0 0.0
    %1140 = vmatprep.subr.mxu0 0.0
    %1141 = vmatpush1.msra.mxu0 0.0
    %1142 = vmatprep.mubr.f32.mxu0 0.0
    %1143 = vmatmul.mubr.f32.gmra.mrb[0].mxu0 %v727
    %v1144 = vpop.f32.mrb[0].mxu0
    %v1145 = vadd.f32 0.0, %v1144
    %v1146 = vpop.f32.mrb[0].mxu0
    %1147 = vmatprep.mubr.f32.mxu0 0.0
    %1148 = vmatmul.mubr.f32.gmra.mrb[0].mxu0 %v730
    %v1149 = vpop.f32.mrb[0].mxu0
    %v1150 = vadd.f32 0.0, %v1149
    %v1151 = vpop.f32.mrb[0].mxu0
    %1152 = vmatprep.mubr.f32.mxu0 0.0
    %1153 = vmatmul.mubr.f32.gmra.mrb[0].mxu0 %v733
    %v1154 = vpop.f32.mrb[0].mxu0
    %v1155 = vadd.f32 0.0, %v1154
    %v1156 = vpop.f32.mrb[0].mxu0
    %1157 = vmatprep.mubr.f32.mxu0 0.0
    %1158 = vmatmul.mubr.f32.gmra.mrb[0].mxu0 %v736
    %v1159 = vpop.f32.mrb[0].mxu0
    %v1160 = vadd.f32 0.0, %v1159
    %v1161 = vpop.f32.mrb[0].mxu0
    %1162 = vdwg.mxu0
    %1163 = vmatprep.subr.mxu0 0.0
    %1164 = vmatpush1.msra.mxu0 %v556
    %1165 = vmatprep.subr.mxu0 0.0
    %1166 = vmatpush1.msra.mxu0 %v561
    %1167 = vmatprep.subr.mxu0 0.0
    %1168 = vmatpush1.msra.mxu0 0.0
    %1169 = vmatprep.subr.mxu0 0.0
    %1170 = vmatpush1.msra.mxu0 0.0
    %1171 = vmatprep.subr.mxu0 0.0
    %1172 = vmatpush1.msra.mxu0 0.0
    %1173 = vmatprep.subr.mxu0 0.0
    %1174 = vmatpush1.msra.mxu0 0.0
    %1175 = vmatprep.subr.mxu0 0.0
    %1176 = vmatpush1.msra.mxu0 0.0
    %1177 = vmatprep.subr.mxu0 0.0
    %1178 = vmatpush1.msra.mxu0 0.0
    %1179 = vmatprep.subr.mxu0 0.0
    %1180 = vmatpush1.msra.mxu0 0.0
    %1181 = vmatprep.subr.mxu0 0.0
    %1182 = vmatpush1.msra.mxu0 0.0
    %1183 = vmatprep.subr.mxu0 0.0
    %1184 = vmatpush1.msra.mxu0 0.0
    %1185 = vmatprep.subr.mxu0 0.0
    %1186 = vmatpush1.msra.mxu0 0.0
    %1187 = vmatprep.subr.mxu0 0.0
    %1188 = vmatpush1.msra.mxu0 0.0
    %1189 = vmatprep.subr.mxu0 0.0
    %1190 = vmatpush1.msra.mxu0 0.0
    %1191 = vmatprep.subr.mxu0 0.0
    %1192 = vmatpush1.msra.mxu0 0.0
    %1193 = vmatprep.subr.mxu0 0.0
    %1194 = vmatpush1.msra.mxu0 0.0
    %1195 = vmatprep.subr.mxu0 0.0
    %1196 = vmatpush1.msra.mxu0 0.0
    %1197 = vmatprep.subr.mxu0 0.0
    %1198 = vmatpush1.msra.mxu0 0.0
    %1199 = vmatprep.subr.mxu0 0.0
    %1200 = vmatpush1.msra.mxu0 0.0
    %1201 = vmatprep.subr.mxu0 0.0
    %1202 = vmatpush1.msra.mxu0 0.0
    %1203 = vmatprep.subr.mxu0 0.0
    %1204 = vmatpush1.msra.mxu0 0.0
    %1205 = vmatprep.subr.mxu0 0.0
    %1206 = vmatpush1.msra.mxu0 0.0
    %1207 = vmatprep.subr.mxu0 0.0
    %1208 = vmatpush1.msra.mxu0 0.0
    %1209 = vmatprep.subr.mxu0 0.0
    %1210 = vmatpush1.msra.mxu0 0.0
    %1211 = vmatprep.subr.mxu0 0.0
    %1212 = vmatpush1.msra.mxu0 0.0
    %1213 = vmatprep.subr.mxu0 0.0
    %1214 = vmatpush1.msra.mxu0 0.0
    %1215 = vmatprep.subr.mxu0 0.0
    %1216 = vmatpush1.msra.mxu0 0.0
    %1217 = vmatprep.subr.mxu0 0.0
    %1218 = vmatpush1.msra.mxu0 0.0
    %1219 = vmatprep.subr.mxu0 0.0
    %1220 = vmatpush1.msra.mxu0 0.0
    %1221 = vmatprep.subr.mxu0 0.0
    %1222 = vmatpush1.msra.mxu0 0.0
    %1223 = vmatprep.subr.mxu0 0.0
    %1224 = vmatpush1.msra.mxu0 0.0
    %1225 = vmatprep.subr.mxu0 0.0
    %1226 = vmatpush1.msra.mxu0 0.0
    %1227 = vmatprep.mubr.f32.mxu0 0.0
    %1228 = vmatmul.mubr.f32.gmra.mrb[0].mxu0 %v727
    %v1229 = vpop.f32.mrb[0].mxu0
    %v1230 = vadd.f32 0.0, %v1229
    %v1231 = vpop.f32.mrb[0].mxu0
    %1232 = vmatprep.mubr.f32.mxu0 0.0
    %1233 = vmatmul.mubr.f32.gmra.mrb[0].mxu0 %v730
    %v1234 = vpop.f32.mrb[0].mxu0
    %v1235 = vadd.f32 0.0, %v1234
    %v1236 = vpop.f32.mrb[0].mxu0
    %1237 = vmatprep.mubr.f32.mxu0 0.0
    %1238 = vmatmul.mubr.f32.gmra.mrb[0].mxu0 %v733
    %v1239 = vpop.f32.mrb[0].mxu0
    %v1240 = vadd.f32 0.0, %v1239
    %v1241 = vpop.f32.mrb[0].mxu0
    %1242 = vmatprep.mubr.f32.mxu0 0.0
    %1243 = vmatmul.mubr.f32.gmra.mrb[0].mxu0 %v736
    %v1244 = vpop.f32.mrb[0].mxu0
    %v1245 = vadd.f32 0.0, %v1244
    %v1246 = vpop.f32.mrb[0].mxu0
    %1247 = vdwg.mxu0
    %1248 = vmatprep.subr.mxu0 0.0
    %1249 = vmatpush1.msra.mxu0 %v637
    %1250 = vmatprep.subr.mxu0 0.0
    %1251 = vmatpush1.msra.mxu0 %v642
    %1252 = vmatprep.subr.mxu0 0.0
    %1253 = vmatpush1.msra.mxu0 0.0
    %1254 = vmatprep.subr.mxu0 0.0
    %1255 = vmatpush1.msra.mxu0 0.0
    %1256 = vmatprep.subr.mxu0 0.0
    %1257 = vmatpush1.msra.mxu0 0.0
    %1258 = vmatprep.subr.mxu0 0.0
    %1259 = vmatpush1.msra.mxu0 0.0
    %1260 = vmatprep.subr.mxu0 0.0
    %1261 = vmatpush1.msra.mxu0 0.0
    %1262 = vmatprep.subr.mxu0 0.0
    %1263 = vmatpush1.msra.mxu0 0.0
    %1264 = vmatprep.subr.mxu0 0.0
    %1265 = vmatpush1.msra.mxu0 0.0
    %1266 = vmatprep.subr.mxu0 0.0
    %1267 = vmatpush1.msra.mxu0 0.0
    %1268 = vmatprep.subr.mxu0 0.0
    %1269 = vmatpush1.msra.mxu0 0.0
    %1270 = vmatprep.subr.mxu0 0.0
    %1271 = vmatpush1.msra.mxu0 0.0
    %1272 = vmatprep.subr.mxu0 0.0
    %1273 = vmatpush1.msra.mxu0 0.0
    %1274 = vmatprep.subr.mxu0 0.0
    %1275 = vmatpush1.msra.mxu0 0.0
    %1276 = vmatprep.subr.mxu0 0.0
    %1277 = vmatpush1.msra.mxu0 0.0
    %1278 = vmatprep.subr.mxu0 0.0
    %1279 = vmatpush1.msra.mxu0 0.0
    %1280 = vmatprep.subr.mxu0 0.0
    %1281 = vmatpush1.msra.mxu0 0.0
    %1282 = vmatprep.subr.mxu0 0.0
    %1283 = vmatpush1.msra.mxu0 0.0
    %1284 = vmatprep.subr.mxu0 0.0
    %1285 = vmatpush1.msra.mxu0 0.0
    %1286 = vmatprep.subr.mxu0 0.0
    %1287 = vmatpush1.msra.mxu0 0.0
    %1288 = vmatprep.subr.mxu0 0.0
    %1289 = vmatpush1.msra.mxu0 0.0
    %1290 = vmatprep.subr.mxu0 0.0
    %1291 = vmatpush1.msra.mxu0 0.0
    %1292 = vmatprep.subr.mxu0 0.0
    %1293 = vmatpush1.msra.mxu0 0.0
    %1294 = vmatprep.subr.mxu0 0.0
    %1295 = vmatpush1.msra.mxu0 0.0
    %1296 = vmatprep.subr.mxu0 0.0
    %1297 = vmatpush1.msra.mxu0 0.0
    %1298 = vmatprep.subr.mxu0 0.0
    %1299 = vmatpush1.msra.mxu0 0.0
    %1300 = vmatprep.subr.mxu0 0.0
    %1301 = vmatpush1.msra.mxu0 0.0
    %1302 = vmatprep.subr.mxu0 0.0
    %1303 = vmatpush1.msra.mxu0 0.0
    %1304 = vmatprep.subr.mxu0 0.0
    %1305 = vmatpush1.msra.mxu0 0.0
    %1306 = vmatprep.subr.mxu0 0.0
    %1307 = vmatpush1.msra.mxu0 0.0
    %1308 = vmatprep.subr.mxu0 0.0
    %1309 = vmatpush1.msra.mxu0 0.0
    %1310 = vmatprep.subr.mxu0 0.0
    %1311 = vmatpush1.msra.mxu0 0.0
    %1312 = vmatprep.mubr.f32.mxu0 0.0
    %1313 = vmatmul.mubr.f32.gmra.mrb[0].mxu0 %v727
    %v1314 = vpop.f32.mrb[0].mxu0
    %v1315 = vadd.f32 0.0, %v1314
    %v1316 = vpop.f32.mrb[0].mxu0
    %1317 = vmatprep.mubr.f32.mxu0 0.0
    %1318 = vmatmul.mubr.f32.gmra.mrb[0].mxu0 %v730
    %v1319 = vpop.f32.mrb[0].mxu0
    %v1320 = vadd.f32 0.0, %v1319
    %v1321 = vpop.f32.mrb[0].mxu0
    %1322 = vmatprep.mubr.f32.mxu0 0.0
    %1323 = vmatmul.mubr.f32.gmra.mrb[0].mxu0 %v733
    %v1324 = vpop.f32.mrb[0].mxu0
    %v1325 = vadd.f32 0.0, %v1324
    %v1326 = vpop.f32.mrb[0].mxu0
    %1327 = vmatprep.mubr.f32.mxu0 0.0
    %1328 = vmatmul.mubr.f32.gmra.mrb[0].mxu0 %v736
    %v1329 = vpop.f32.mrb[0].mxu0
    %v1330 = vadd.f32 0.0, %v1329
    %v1331 = vpop.f32.mrb[0].mxu0
    %1332 = vdwg.mxu0
    %1333 = vmatprep.subr.mxu0 0.0
    %1334 = vmatpush1.msra.mxu0 %v718
    %1335 = vmatprep.subr.mxu0 0.0
    %1336 = vmatpush1.msra.mxu0 %v723
    %1337 = vmatprep.subr.mxu0 0.0
    %1338 = vmatpush1.msra.mxu0 0.0
    %1339 = vmatprep.subr.mxu0 0.0
    %1340 = vmatpush1.msra.mxu0 0.0
    %1341 = vmatprep.subr.mxu0 0.0
    %1342 = vmatpush1.msra.mxu0 0.0
    %1343 = vmatprep.subr.mxu0 0.0
    %1344 = vmatpush1.msra.mxu0 0.0
    %1345 = vmatprep.subr.mxu0 0.0
    %1346 = vmatpush1.msra.mxu0 0.0
    %1347 = vmatprep.subr.mxu0 0.0
    %1348 = vmatpush1.msra.mxu0 0.0
    %1349 = vmatprep.subr.mxu0 0.0
    %1350 = vmatpush1.msra.mxu0 0.0
    %1351 = vmatprep.subr.mxu0 0.0
    %1352 = vmatpush1.msra.mxu0 0.0
    %1353 = vmatprep.subr.mxu0 0.0
    %1354 = vmatpush1.msra.mxu0 0.0
    %1355 = vmatprep.subr.mxu0 0.0
    %1356 = vmatpush1.msra.mxu0 0.0
    %1357 = vmatprep.subr.mxu0 0.0
    %1358 = vmatpush1.msra.mxu0 0.0
    %1359 = vmatprep.subr.mxu0 0.0
    %1360 = vmatpush1.msra.mxu0 0.0
    %1361 = vmatprep.subr.mxu0 0.0
    %1362 = vmatpush1.msra.mxu0 0.0
    %1363 = vmatprep.subr.mxu0 0.0
    %1364 = vmatpush1.msra.mxu0 0.0
    %1365 = vmatprep.subr.mxu0 0.0
    %1366 = vmatpush1.msra.mxu0 0.0
    %1367 = vmatprep.subr.mxu0 0.0
    %1368 = vmatpush1.msra.mxu0 0.0
    %1369 = vmatprep.subr.mxu0 0.0
    %1370 = vmatpush1.msra.mxu0 0.0
    %1371 = vmatprep.subr.mxu0 0.0
    %1372 = vmatpush1.msra.mxu0 0.0
    %1373 = vmatprep.subr.mxu0 0.0
    %1374 = vmatpush1.msra.mxu0 0.0
    %1375 = vmatprep.subr.mxu0 0.0
    %1376 = vmatpush1.msra.mxu0 0.0
    %1377 = vmatprep.subr.mxu0 0.0
    %1378 = vmatpush1.msra.mxu0 0.0
    %1379 = vmatprep.subr.mxu0 0.0
    %1380 = vmatpush1.msra.mxu0 0.0
    %1381 = vmatprep.subr.mxu0 0.0
    %1382 = vmatpush1.msra.mxu0 0.0
    %1383 = vmatprep.subr.mxu0 0.0
    %1384 = vmatpush1.msra.mxu0 0.0
    %1385 = vmatprep.subr.mxu0 0.0
    %1386 = vmatpush1.msra.mxu0 0.0
    %1387 = vmatprep.subr.mxu0 0.0
    %1388 = vmatpush1.msra.mxu0 0.0
    %1389 = vmatprep.subr.mxu0 0.0
    %1390 = vmatpush1.msra.mxu0 0.0
    %1391 = vmatprep.subr.mxu0 0.0
    %1392 = vmatpush1.msra.mxu0 0.0
    %1393 = vmatprep.subr.mxu0 0.0
    %1394 = vmatpush1.msra.mxu0 0.0
    %1395 = vmatprep.subr.mxu0 0.0
    %1396 = vmatpush1.msra.mxu0 0.0
    %1397 = vmatprep.mubr.f32.mxu0 0.0
    %1398 = vmatmul.mubr.f32.gmra.mrb[0].mxu0 %v727
    %v1399 = vpop.f32.mrb[0].mxu0
    %v1400 = vadd.f32 0.0, %v1399
    %v1401 = vpop.f32.mrb[0].mxu0
    %1402 = vmatprep.mubr.f32.mxu0 0.0
    %1403 = vmatmul.mubr.f32.gmra.mrb[0].mxu0 %v730
    %v1404 = vpop.f32.mrb[0].mxu0
    %v1405 = vadd.f32 0.0, %v1404
    %v1406 = vpop.f32.mrb[0].mxu0
    %1407 = vmatprep.mubr.f32.mxu0 0.0
    %1408 = vmatmul.mubr.f32.gmra.mrb[0].mxu0 %v733
    %v1409 = vpop.f32.mrb[0].mxu0
    %v1410 = vadd.f32 0.0, %v1409
    %v1411 = vpop.f32.mrb[0].mxu0
    %1412 = vmatprep.mubr.f32.mxu0 0.0
    %1413 = vmatmul.mubr.f32.gmra.mrb[0].mxu0 %v736
    %v1414 = vpop.f32.mrb[0].mxu0
    %v1415 = vadd.f32 0.0, %v1414
    %v1416 = vpop.f32.mrb[0].mxu0
    %1417 = vdwg.mxu0
    %vm1418 = vcmask 195584
    %1419 = vst.msk [vmem:[%s3] sm:$0xff] %vm1418, %v805
    %1420 = vst.msk [vmem:[%s3 + $0x8] sm:$0xff] %vm1418, %v810
    %1421 = vst.msk [vmem:[%s3 + $0x10] sm:$0xff] %vm1418, %v815
    %1422 = vst.msk [vmem:[%s3 + $0x18] sm:$0xff] %vm1418, %v820
    %1423 = vst.msk [vmem:[%s3 + $0x20] sm:$0xff] %vm1418, %v890
    %1424 = vst.msk [vmem:[%s3 + $0x28] sm:$0xff] %vm1418, %v895
    %1425 = vst.msk [vmem:[%s3 + $0x30] sm:$0xff] %vm1418, %v900
    %1426 = vst.msk [vmem:[%s3 + $0x38] sm:$0xff] %vm1418, %v905
    %1427 = vst.msk [vmem:[%s3 + $0x40] sm:$0xff] %vm1418, %v975
    %1428 = vst.msk [vmem:[%s3 + $0x48] sm:$0xff] %vm1418, %v980
    %1429 = vst.msk [vmem:[%s3 + $0x50] sm:$0xff] %vm1418, %v985
    %1430 = vst.msk [vmem:[%s3 + $0x58] sm:$0xff] %vm1418, %v990
    %1431 = vst.msk [vmem:[%s3 + $0x60] sm:$0xff] %vm1418, %v1060
    %1432 = vst.msk [vmem:[%s3 + $0x68] sm:$0xff] %vm1418, %v1065
    %1433 = vst.msk [vmem:[%s3 + $0x70] sm:$0xff] %vm1418, %v1070
    %1434 = vst.msk [vmem:[%s3 + $0x78] sm:$0xff] %vm1418, %v1075
    %1435 = vst.msk [vmem:[%s3 + $0x80] sm:$0xff] %vm1418, %v1145
    %1436 = vst.msk [vmem:[%s3 + $0x88] sm:$0xff] %vm1418, %v1150
    %1437 = vst.msk [vmem:[%s3 + $0x90] sm:$0xff] %vm1418, %v1155
    %1438 = vst.msk [vmem:[%s3 + $0x98] sm:$0xff] %vm1418, %v1160
    %1439 = vst.msk [vmem:[%s3 + $0xa0] sm:$0xff] %vm1418, %v1230
    %1440 = vst.msk [vmem:[%s3 + $0xa8] sm:$0xff] %vm1418, %v1235
    %1441 = vst.msk [vmem:[%s3 + $0xb0] sm:$0xff] %vm1418, %v1240
    %1442 = vst.msk [vmem:[%s3 + $0xb8] sm:$0xff] %vm1418, %v1245
    %1443 = vst.msk [vmem:[%s3 + $0xc0] sm:$0xff] %vm1418, %v1315
    %1444 = vst.msk [vmem:[%s3 + $0xc8] sm:$0xff] %vm1418, %v1320
    %1445 = vst.msk [vmem:[%s3 + $0xd0] sm:$0xff] %vm1418, %v1325
    %1446 = vst.msk [vmem:[%s3 + $0xd8] sm:$0xff] %vm1418, %v1330
    %1447 = vst.msk [vmem:[%s3 + $0xe0] sm:$0xff] %vm1418, %v1400
    %1448 = vst.msk [vmem:[%s3 + $0xe8] sm:$0xff] %vm1418, %v1405
    %1449 = vst.msk [vmem:[%s3 + $0xf0] sm:$0xff] %vm1418, %v1410
    %1450 = vst.msk [vmem:[%s3 + $0xf8] sm:$0xff] %vm1418, %v1415
    // Predicated region
    $region26: #{upsample_bilinear.1} parent=1 // pred_check
      _
    $region27: #{upsample_bilinear.1} parent=1 // pred_check_branch
      %1452 = sbr.rel (0) target = $region29
    $region28: #{upsample_bilinear.1} parent=1 // pred_region
      _
    $region29: #{upsample_bilinear.1} parent=1 // pred_fallthru
      _
    // Predicated region
    $region30: #{upsample_bilinear.1} parent=1 // pred_check
      _
    $region31: #{upsample_bilinear.1} parent=1 // pred_check_branch
      %1454 = sbr.rel (0) target = $region33
    $region32: #{upsample_bilinear.1} parent=1 // pred_region
      _
    $region33: #{upsample_bilinear.1} parent=1 // pred_fallthru
      _
    %1455 = vsyncpa [#allocation3], 1
    %1456 = vsyncpa [#allocation5], 1

</llo_original>
